<compile_context>
chip_gen: v7x
topology: tpu7x:2x2x1
jax: 0.10.0
libtpu: 0.0.40
codegen_flags: <defaults>
</compile_context>

<pallas_src>
import jax
import jax.numpy as jnp
import numpy as np
from jax.experimental import pallas as pl
from jax.experimental.pallas import tpu as pltpu

IN_DIM = 3 * 32 * 32                      # 3072
H1, H2, H3, OUT = 128, 256, 128, 128      # padded (lane-aligned) widths
REAL_H1, REAL_H2, REAL_H3, REAL_OUT = 100, 200, 100, 10

DROPOUT_P = 0.2
KEEP_SCALE = 1.0 / (1.0 - DROPOUT_P)
# keep element iff bits >= DROP_THRESHOLD  ->  P(keep) = 1 - p (exact in u32)
DROP_THRESHOLD = np.uint32(int(DROPOUT_P * (1 << 32)))


def _mlp_kernel(x_ref, bits_ref,
                w1_ref, b1_ref, w2_ref, b2_ref,
                w3_ref, b3_ref, w4_ref, b4_ref,
                o_ref):
    # --- l1 (bf16 stream, f32 accumulate) + ReLU ---
    h = jnp.dot(x_ref[...], w1_ref[...], preferred_element_type=jnp.float32)
    h = jnp.maximum(h + b1_ref[...], 0.0)
    # --- l2 + ReLU ---
    h = jnp.dot(h, w2_ref[...], preferred_element_type=jnp.float32)
    h = jnp.maximum(h + b2_ref[...], 0.0)
    # --- l3 + ReLU ---
    h = jnp.dot(h, w3_ref[...], preferred_element_type=jnp.float32)
    h = jnp.maximum(h + b3_ref[...], 0.0)
    # --- dropout(p=0.2), training semantics: keep w.p. 0.8, scale by 1/0.8 ---
    keep = bits_ref[...] >= DROP_THRESHOLD
    h = jnp.where(keep, h * KEEP_SCALE, 0.0)
    # --- l4 ---
    logits = jnp.dot(h, w4_ref[...], preferred_element_type=jnp.float32) + b4_ref[...]
    # mask padded class columns, softmax over the real 10
    col = jax.lax.broadcasted_iota(jnp.int32, logits.shape, 1)
    logits = jnp.where(col < REAL_OUT, logits, -jnp.inf)
    m = jnp.max(logits, axis=1, keepdims=True)
    e = jnp.exp(logits - m)
    o_ref[...] = (e / jnp.sum(e, axis=1, keepdims=True)).astype(o_ref.dtype)


def _round_up(n, m):
    return (n + m - 1) // m * m


def _tile_b(batch):
    # big tile for real batches (pipelining / MXU rows), small one for tests
    return min(512, _round_up(batch, 8))


def _dropout_bits(seed, padded_batch):
    key = jax.random.PRNGKey(seed)
    return jax.random.bits(key, (padded_batch, H3), dtype=jnp.uint32)


@jax.jit
def mlp_forward(x_nchw, params, seed):
    """x_nchw: (B, 3, 32, 32) float32. Returns (B, 10) softmax probabilities."""
    B = x_nchw.shape[0]
    x = x_nchw.reshape(B, IN_DIM).astype(jnp.bfloat16)   # torch x.view(-1, 3072)

    tile_b = _tile_b(B)
    pB = _round_up(B, tile_b)
    if pB != B:
        x = jnp.pad(x, ((0, pB - B), (0, 0)))

    bits = _dropout_bits(seed, pB)
    w1, b1, w2, b2, w3, b3, w4, b4 = params

    const2d = lambda i: (0, 0)
    out = pl.pallas_call(
        _mlp_kernel,
        grid=(pB // tile_b,),
        in_specs=[
            pl.BlockSpec((tile_b, IN_DIM), lambda i: (i, 0)),   # x (streamed)
            pl.BlockSpec((tile_b, H3), lambda i: (i, 0)),       # dropout bits
            pl.BlockSpec((IN_DIM, H1), const2d),                # W1 (resident)
            pl.BlockSpec((1, H1), const2d),                     # b1
            pl.BlockSpec((H1, H2), const2d),                    # W2
            pl.BlockSpec((1, H2), const2d),                     # b2
            pl.BlockSpec((H2, H3), const2d),                    # W3
            pl.BlockSpec((1, H3), const2d),                     # b3
            pl.BlockSpec((H3, OUT), const2d),                   # W4
            pl.BlockSpec((1, OUT), const2d),                    # b4
        ],
        out_specs=pl.BlockSpec((tile_b, OUT), lambda i: (i, 0)),
        out_shape=jax.ShapeDtypeStruct((pB, OUT), jnp.float32),
        compiler_params=pltpu.CompilerParams(
            dimension_semantics=("parallel",),
            vmem_limit_bytes=32 << 20,
        ),
    )(x, bits, w1, b1, w2, b2, w3, b3, w4, b4)

    return out[:B, :REAL_OUT]


def init_params(key):
    """nn.Linear-style init (uniform +-1/sqrt(fan_in)); weights stored as
    (in_features, out_features) and zero-padded to lane-aligned widths."""
    real = [(IN_DIM, REAL_H1), (REAL_H1, REAL_H2), (REAL_H2, REAL_H3), (REAL_H3, REAL_OUT)]
    padded = [(IN_DIM, H1), (H1, H2), (H2, H3), (H3, OUT)]
    params = []
    for (fi, fo), (pi, po) in zip(real, padded):
        key, kw, kb = jax.random.split(key, 3)
        bound = float(1.0 / np.sqrt(fi))
        w = jax.random.uniform(kw, (fi, fo), jnp.float32, -bound, bound)
        b = jax.random.uniform(kb, (fo,), jnp.float32, -bound, bound)
        wp = jnp.zeros((pi, po), jnp.float32).at[:fi, :fo].set(w)
        bp = jnp.zeros((1, po), jnp.float32).at[0, :fo].set(b)
        params.append(wp)
        params.append(bp)
    params[0] = params[0].astype(jnp.bfloat16)   # W1 joins the bf16 stream
    return tuple(params)


def mlp_reference(x_nchw, params, seed):
    """Pure-JAX reference mirroring the kernel's math (same dropout bits)."""
    hi = jax.lax.Precision.HIGHEST
    B = x_nchw.shape[0]
    x = x_nchw.reshape(B, IN_DIM).astype(jnp.bfloat16).astype(jnp.float32)
    w1, b1, w2, b2, w3, b3, w4, b4 = params
    h = jnp.maximum(jnp.dot(x, w1.astype(jnp.float32), precision=hi) + b1, 0.0)
    h = jnp.maximum(jnp.dot(h, w2, precision=hi) + b2, 0.0)
    h = jnp.maximum(jnp.dot(h, w3, precision=hi) + b3, 0.0)
    bits = _dropout_bits(seed, _round_up(B, _tile_b(B)))[:B]
    h = jnp.where(bits >= DROP_THRESHOLD, h * KEEP_SCALE, 0.0)
    logits = (jnp.dot(h, w4, precision=hi) + b4)[:, :REAL_OUT]
    return jax.nn.softmax(logits, axis=1)


if __name__ == "__main__":
    key = jax.random.PRNGKey(0)
    key, kx = jax.random.split(key)

    # Shapes dictated by the module: Linear(3*32*32, ...) -> CIFAR-10 images.
    x = jax.random.normal(kx, (2, 3, 32, 32), dtype=jnp.float32)
    params = init_params(key)

    out = mlp_forward(x, params, 0)
    out = jax.block_until_ready(out)

    assert out.shape == (2, 10), out.shape
    # softmax rows must sum to ~1
    row_sums = jnp.sum(out, axis=1)
    assert jnp.allclose(row_sums, jnp.ones_like(row_sums), atol=1e-4), row_sums
    # compare against the pure-JAX reference (same dropout mask)
    ref = mlp_reference(x, params, 0)
    assert jnp.allclose(out, ref, atol=5e-3), float(jnp.max(jnp.abs(out - ref)))

    print("KERNEL_OK")
</pallas_src>

<mosaic_0001>
module attributes {stable_mosaic.version = 11 : i64} {
  func.func @_mlp_kernel(%arg0: i32, %arg1: memref<8x3072xbf16, #tpu.memory_space<vmem>>, %arg2: memref<8x128xi32, #tpu.memory_space<vmem>>, %arg3: memref<3072x128xbf16, #tpu.memory_space<vmem>>, %arg4: memref<1x128xf32, #tpu.memory_space<vmem>>, %arg5: memref<128x256xf32, #tpu.memory_space<vmem>>, %arg6: memref<1x256xf32, #tpu.memory_space<vmem>>, %arg7: memref<256x128xf32, #tpu.memory_space<vmem>>, %arg8: memref<1x128xf32, #tpu.memory_space<vmem>>, %arg9: memref<128x128xf32, #tpu.memory_space<vmem>>, %arg10: memref<1x128xf32, #tpu.memory_space<vmem>>, %arg11: memref<8x128xf32, #tpu.memory_space<vmem>>) attributes {dimension_semantics = [#tpu.dimension_semantics<parallel>], iteration_bounds = array<i64: 1>, scalar_prefetch = 0 : i64, scratch_operands = 0 : i64, tpu.core_type = #tpu.core_type<tc>, window_params = [{transform_indices = @transform_0, window_bounds = array<i64: 8, 3072>}, {transform_indices = @transform_1, window_bounds = array<i64: 8, 128>}, {pipeline_mode = #tpu.pipeline_mode<synchronous>, transform_indices = @transform_2, window_bounds = array<i64: 3072, 128>}, {pipeline_mode = #tpu.pipeline_mode<synchronous>, transform_indices = @transform_3, window_bounds = array<i64: 1, 128>}, {pipeline_mode = #tpu.pipeline_mode<synchronous>, transform_indices = @transform_4, window_bounds = array<i64: 128, 256>}, {pipeline_mode = #tpu.pipeline_mode<synchronous>, transform_indices = @transform_5, window_bounds = array<i64: 1, 256>}, {pipeline_mode = #tpu.pipeline_mode<synchronous>, transform_indices = @transform_6, window_bounds = array<i64: 256, 128>}, {pipeline_mode = #tpu.pipeline_mode<synchronous>, transform_indices = @transform_7, window_bounds = array<i64: 1, 128>}, {pipeline_mode = #tpu.pipeline_mode<synchronous>, transform_indices = @transform_8, window_bounds = array<i64: 128, 128>}, {pipeline_mode = #tpu.pipeline_mode<synchronous>, transform_indices = @transform_9, window_bounds = array<i64: 1, 128>}, {transform_indices = @transform_10, window_bounds = array<i64: 8, 128>}]} {
    %c0 = arith.constant 0 : index
    %c0_0 = arith.constant 0 : index
    %0 = vector.load %arg1[%c0, %c0_0] : memref<8x3072xbf16, #tpu.memory_space<vmem>>, vector<8x3072xbf16>
    %c0_1 = arith.constant 0 : index
    %c0_2 = arith.constant 0 : index
    %1 = vector.load %arg3[%c0_1, %c0_2] : memref<3072x128xbf16, #tpu.memory_space<vmem>>, vector<3072x128xbf16>
    %cst = arith.constant dense<0.000000e+00> : vector<8x128xf32>
    %2 = tpu.matmul %0, %1, %cst {dimension_numbers = #tpu.dot_dimension_numbers<[1], [0], [0], [1], [0, 0, 1, 1], [], []>} : vector<8x3072xbf16>, vector<3072x128xbf16>, vector<8x128xf32> -> vector<8x128xf32>
    %c0_3 = arith.constant 0 : index
    %c0_4 = arith.constant 0 : index
    %3 = vector.load %arg4[%c0_3, %c0_4] : memref<1x128xf32, #tpu.memory_space<vmem>>, vector<1x128xf32>
    %4 = vector.broadcast %3 : vector<1x128xf32> to vector<8x128xf32>
    %5 = arith.addf %2, %4 : vector<8x128xf32>
    %cst_5 = arith.constant 0.000000e+00 : f32
    %6 = vector.broadcast %cst_5 : f32 to vector<8x128xf32>
    %7 = arith.maximumf %5, %6 : vector<8x128xf32>
    %c0_6 = arith.constant 0 : index
    %c0_7 = arith.constant 0 : index
    %8 = vector.load %arg5[%c0_6, %c0_7] : memref<128x256xf32, #tpu.memory_space<vmem>>, vector<128x256xf32>
    %cst_8 = arith.constant dense<0.000000e+00> : vector<8x256xf32>
    %9 = tpu.matmul %7, %8, %cst_8 {dimension_numbers = #tpu.dot_dimension_numbers<[1], [0], [0], [1], [0, 0, 1, 1], [], []>} : vector<8x128xf32>, vector<128x256xf32>, vector<8x256xf32> -> vector<8x256xf32>
    %c0_9 = arith.constant 0 : index
    %c0_10 = arith.constant 0 : index
    %10 = vector.load %arg6[%c0_9, %c0_10] : memref<1x256xf32, #tpu.memory_space<vmem>>, vector<1x256xf32>
    %11 = vector.broadcast %10 : vector<1x256xf32> to vector<8x256xf32>
    %12 = arith.addf %9, %11 : vector<8x256xf32>
    %cst_11 = arith.constant 0.000000e+00 : f32
    %13 = vector.broadcast %cst_11 : f32 to vector<8x256xf32>
    %14 = arith.maximumf %12, %13 : vector<8x256xf32>
    %c0_12 = arith.constant 0 : index
    %c0_13 = arith.constant 0 : index
    %15 = vector.load %arg7[%c0_12, %c0_13] : memref<256x128xf32, #tpu.memory_space<vmem>>, vector<256x128xf32>
    %cst_14 = arith.constant dense<0.000000e+00> : vector<8x128xf32>
    %16 = tpu.matmul %14, %15, %cst_14 {dimension_numbers = #tpu.dot_dimension_numbers<[1], [0], [0], [1], [0, 0, 1, 1], [], []>} : vector<8x256xf32>, vector<256x128xf32>, vector<8x128xf32> -> vector<8x128xf32>
    %c0_15 = arith.constant 0 : index
    %c0_16 = arith.constant 0 : index
    %17 = vector.load %arg8[%c0_15, %c0_16] : memref<1x128xf32, #tpu.memory_space<vmem>>, vector<1x128xf32>
    %18 = vector.broadcast %17 : vector<1x128xf32> to vector<8x128xf32>
    %19 = arith.addf %16, %18 : vector<8x128xf32>
    %cst_17 = arith.constant 0.000000e+00 : f32
    %20 = vector.broadcast %cst_17 : f32 to vector<8x128xf32>
    %21 = arith.maximumf %19, %20 : vector<8x128xf32>
    %c0_18 = arith.constant 0 : index
    %c0_19 = arith.constant 0 : index
    %22 = vector.load %arg2[%c0_18, %c0_19] : memref<8x128xi32, #tpu.memory_space<vmem>>, vector<8x128xi32>
    %c858993459_i32 = arith.constant 858993459 : i32
    %23 = vector.broadcast %c858993459_i32 : i32 to vector<8x128xi32>
    %24 = arith.cmpi uge, %22, %23 : vector<8x128xi32>
    %cst_20 = arith.constant 1.250000e+00 : f32
    %25 = vector.broadcast %cst_20 : f32 to vector<8x128xf32>
    %26 = arith.mulf %21, %25 : vector<8x128xf32>
    %cst_21 = arith.constant 0.000000e+00 : f32
    %27 = vector.broadcast %cst_21 : f32 to vector<8x128xf32>
    %28 = arith.select %24, %26, %27 : vector<8x128xi1>, vector<8x128xf32>
    %c0_22 = arith.constant 0 : index
    %c0_23 = arith.constant 0 : index
    %29 = vector.load %arg9[%c0_22, %c0_23] : memref<128x128xf32, #tpu.memory_space<vmem>>, vector<128x128xf32>
    %cst_24 = arith.constant dense<0.000000e+00> : vector<8x128xf32>
    %30 = tpu.matmul %28, %29, %cst_24 {dimension_numbers = #tpu.dot_dimension_numbers<[1], [0], [0], [1], [0, 0, 1, 1], [], []>} : vector<8x128xf32>, vector<128x128xf32>, vector<8x128xf32> -> vector<8x128xf32>
    %c0_25 = arith.constant 0 : index
    %c0_26 = arith.constant 0 : index
    %31 = vector.load %arg10[%c0_25, %c0_26] : memref<1x128xf32, #tpu.memory_space<vmem>>, vector<1x128xf32>
    %32 = vector.broadcast %31 : vector<1x128xf32> to vector<8x128xf32>
    %33 = arith.addf %30, %32 : vector<8x128xf32>
    %34 = tpu.iota {dimensions = array<i32: 1>} : vector<8x128xi32>
    %c10_i32 = arith.constant 10 : i32
    %35 = vector.broadcast %c10_i32 : i32 to vector<8x128xi32>
    %36 = arith.cmpi slt, %34, %35 : vector<8x128xi32>
    %cst_27 = arith.constant 0xFF800000 : f32
    %37 = vector.broadcast %cst_27 : f32 to vector<8x128xf32>
    %38 = arith.select %36, %33, %37 : vector<8x128xi1>, vector<8x128xf32>
    %cst_28 = arith.constant dense<0xFF800000> : vector<8xf32>
    %39 = vector.multi_reduction <maximumf>, %38, %cst_28 [1] : vector<8x128xf32> to vector<8xf32>
    %40 = vector.shape_cast %39 : vector<8xf32> to vector<8x1xf32>
    %41 = vector.broadcast %40 : vector<8x1xf32> to vector<8x128xf32>
    %42 = arith.subf %38, %41 : vector<8x128xf32>
    %43 = math.exp %42 : vector<8x128xf32>
    %cst_29 = arith.constant dense<0.000000e+00> : vector<8xf32>
    %44 = vector.multi_reduction <add>, %43, %cst_29 [1] : vector<8x128xf32> to vector<8xf32>
    %45 = vector.shape_cast %44 : vector<8xf32> to vector<8x1xf32>
    %46 = vector.broadcast %45 : vector<8x1xf32> to vector<8x128xf32>
    %47 = arith.divf %43, %46 : vector<8x128xf32>
    %c0_30 = arith.constant 0 : index
    %c0_31 = arith.constant 0 : index
    %48 = vector.load %arg11[%c0_30, %c0_31] : memref<8x128xf32, #tpu.memory_space<vmem>>, vector<8x128xf32>
    tpu.vector_store %arg11[%c0_30, %c0_31], %47 {strides = array<i32>} : memref<8x128xf32, #tpu.memory_space<vmem>>, vector<8x128xf32>,
    return
  }
  func.func @transform_0(%arg0: i32) -> (i32, i32) {
    %c0_i32 = arith.constant 0 : i32
    %c0_i32_0 = arith.constant 0 : i32
    return %arg0, %c0_i32 : i32, i32
  }
  func.func @transform_1(%arg0: i32) -> (i32, i32) {
    %c0_i32 = arith.constant 0 : i32
    %c0_i32_0 = arith.constant 0 : i32
    return %arg0, %c0_i32 : i32, i32
  }
  func.func @transform_2(%arg0: i32) -> (i32, i32) {
    %c0_i32 = arith.constant 0 : i32
    %c0_i32_0 = arith.constant 0 : i32
    %c0_i32_1 = arith.constant 0 : i32
    return %c0_i32, %c0_i32_0 : i32, i32
  }
  func.func @transform_3(%arg0: i32) -> (i32, i32) {
    %c0_i32 = arith.constant 0 : i32
    %c0_i32_0 = arith.constant 0 : i32
    %c0_i32_1 = arith.constant 0 : i32
    return %c0_i32, %c0_i32_0 : i32, i32
  }
  func.func @transform_4(%arg0: i32) -> (i32, i32) {
    %c0_i32 = arith.constant 0 : i32
    %c0_i32_0 = arith.constant 0 : i32
    %c0_i32_1 = arith.constant 0 : i32
    return %c0_i32, %c0_i32_0 : i32, i32
  }
  func.func @transform_5(%arg0: i32) -> (i32, i32) {
    %c0_i32 = arith.constant 0 : i32
    %c0_i32_0 = arith.constant 0 : i32
    %c0_i32_1 = arith.constant 0 : i32
    return %c0_i32, %c0_i32_0 : i32, i32
  }
  func.func @transform_6(%arg0: i32) -> (i32, i32) {
    %c0_i32 = arith.constant 0 : i32
    %c0_i32_0 = arith.constant 0 : i32
    %c0_i32_1 = arith.constant 0 : i32
    return %c0_i32, %c0_i32_0 : i32, i32
  }
  func.func @transform_7(%arg0: i32) -> (i32, i32) {
    %c0_i32 = arith.constant 0 : i32
    %c0_i32_0 = arith.constant 0 : i32
    %c0_i32_1 = arith.constant 0 : i32
    return %c0_i32, %c0_i32_0 : i32, i32
  }
  func.func @transform_8(%arg0: i32) -> (i32, i32) {
    %c0_i32 = arith.constant 0 : i32
    %c0_i32_0 = arith.constant 0 : i32
    %c0_i32_1 = arith.constant 0 : i32
    return %c0_i32, %c0_i32_0 : i32, i32
  }
  func.func @transform_9(%arg0: i32) -> (i32, i32) {
    %c0_i32 = arith.constant 0 : i32
    %c0_i32_0 = arith.constant 0 : i32
    %c0_i32_1 = arith.constant 0 : i32
    return %c0_i32, %c0_i32_0 : i32, i32
  }
  func.func @transform_10(%arg0: i32) -> (i32, i32) {
    %c0_i32 = arith.constant 0 : i32
    %c0_i32_0 = arith.constant 0 : i32
    return %arg0, %c0_i32 : i32, i32
  }
}

</mosaic_0001>

<llo_original>
// kernel: mlp_forward.1
$region0: #{mlp_forward.1}
  #allocation0 [shape = 'u32[]', space=smem, size = 0x4, offset = 0x4, fixed_abs, tag = 'smem constant byte address 0x4 - core index']
  #allocation1 [shape = 'u32[144,128]{1,0:T(1,128)}', space=vmem, size = 0x12000, scoped, tag = 'internal scratch']
  %s0 = inlined_call_operand.vmem [shape: bf16[8,3072], index: 0, kind: input, shape index: {}]
  %s1 = inlined_call_operand.vmem [shape: u32[8,128], index: 1, kind: input, shape index: {}]
  %s2 = inlined_call_operand.hbm [shape: bf16[3072,128], index: 2, kind: input, shape index: {}]
  %s3 = inlined_call_operand.vmem [shape: f32[1,128], index: 3, kind: input, shape index: {}]
  %s4 = inlined_call_operand.vmem [shape: f32[128,256], index: 4, kind: input, shape index: {}]
  %s5 = inlined_call_operand.vmem [shape: f32[1,256], index: 5, kind: input, shape index: {}]
  %s6 = inlined_call_operand.vmem [shape: f32[256,128], index: 6, kind: input, shape index: {}]
  %s7 = inlined_call_operand.vmem [shape: f32[1,128], index: 7, kind: input, shape index: {}]
  %s8 = inlined_call_operand.hbm [shape: f32[128,128], index: 8, kind: input, shape index: {}]
  %s9 = inlined_call_operand.vmem [shape: f32[1,128], index: 9, kind: input, shape index: {}]
  %s10 = inlined_call_operand.vmem [shape: f32[8,128], index: 10, kind: output, shape index: {}]
  %s11 = sld [smem:[#allocation0]]
  $region58: #{mlp_forward.1} parent=0
    _
  %s13 = ssub.s32 1, %s11
  %s14 = scalar_select 0, %s13, %s11
  $region1: #{mlp_forward.1} parent=0
    #allocation2 [shape = 'u8[786432]{0}', space=vmem, size = 0xc0000, scoped, tag = 'input window, operand 2, single buffered']
    #allocation3 [shape = 's32[1]{0}', space=sflag, size = 0x4, scoped, tag = 'scoped memory for mlp_forward.1']
    #allocation4 [shape = 'u8[65536]{0}', space=vmem, size = 0x10000, scoped, tag = 'input window, operand 8, single buffered']
    #allocation5 [shape = 's32[1]{0}', space=sflag, size = 0x4, scoped, tag = 'scoped memory for mlp_forward.1']
    %15 = vsyncpa [#allocation3], 0
    %16 = vsyncpa [#allocation5], 0
    // Predicated region
    $region2: #{mlp_forward.1} parent=1 // pred_check
      _
    $region3: #{mlp_forward.1} parent=1 // pred_check_branch
      %18 = sbr.rel (0) target = $region5
    $region4: #{mlp_forward.1} parent=1 // pred_region
      _
    $region5: #{mlp_forward.1} parent=1 // pred_fallthru
      _
    // Predicated region
    $region6: #{mlp_forward.1} parent=1 // pred_check
      _
    $region7: #{mlp_forward.1} parent=1 // pred_check_branch
      %20 = sbr.rel (0) target = $region9
    $region8: #{mlp_forward.1} parent=1 // pred_region
      _
    $region9: #{mlp_forward.1} parent=1 // pred_fallthru
      _
    // Predicated region
    $region10: #{mlp_forward.1} parent=1 // pred_check
      _
    $region11: #{mlp_forward.1} parent=1 // pred_check_branch
      %22 = sbr.rel (0) target = $region13
    $region12: #{mlp_forward.1} parent=1 // pred_region
      %s24 = ssub.s32 24576, 24576
      %25 = vsyncadd [#allocation3], %s24
      %s26 = sshll.u32 [#allocation2], 4
      %s27 = int_to_ptr.vmem [resolvable:$true] %s26
      %32 = dma.hbm_to_vmem [thread:$0]  %s2, 24576, %s27, [#allocation3], 64, 64, 4
    $region13: #{mlp_forward.1} parent=1 // pred_fallthru
      _
    // Predicated region
    $region14: #{mlp_forward.1} parent=1 // pred_check
      _
    $region15: #{mlp_forward.1} parent=1 // pred_check_branch
      %34 = sbr.rel (0) target = $region17
    $region16: #{mlp_forward.1} parent=1 // pred_region
      _
    $region17: #{mlp_forward.1} parent=1 // pred_fallthru
      _
    // Predicated region
    $region18: #{mlp_forward.1} parent=1 // pred_check
      _
    $region19: #{mlp_forward.1} parent=1 // pred_check_branch
      %36 = sbr.rel (0) target = $region21
    $region20: #{mlp_forward.1} parent=1 // pred_region
      _
    $region21: #{mlp_forward.1} parent=1 // pred_fallthru
      _
    // Predicated region
    $region22: #{mlp_forward.1} parent=1 // pred_check
      _
    $region23: #{mlp_forward.1} parent=1 // pred_check_branch
      %38 = sbr.rel (0) target = $region25
    $region24: #{mlp_forward.1} parent=1 // pred_region
      _
    $region25: #{mlp_forward.1} parent=1 // pred_fallthru
      _
    // Predicated region
    $region26: #{mlp_forward.1} parent=1 // pred_check
      _
    $region27: #{mlp_forward.1} parent=1 // pred_check_branch
      %40 = sbr.rel (0) target = $region29
    $region28: #{mlp_forward.1} parent=1 // pred_region
      _
    $region29: #{mlp_forward.1} parent=1 // pred_fallthru
      _
    // Predicated region
    $region30: #{mlp_forward.1} parent=1 // pred_check
      _
    $region31: #{mlp_forward.1} parent=1 // pred_check_branch
      %42 = sbr.rel (0) target = $region33
    $region32: #{mlp_forward.1} parent=1 // pred_region
      _
    $region33: #{mlp_forward.1} parent=1 // pred_fallthru
      _
    // Predicated region
    $region34: #{mlp_forward.1} parent=1 // pred_check
      _
    $region35: #{mlp_forward.1} parent=1 // pred_check_branch
      %44 = sbr.rel (0) target = $region37
    $region36: #{mlp_forward.1} parent=1 // pred_region
      %s46 = ssub.s32 2048, 2048
      %47 = vsyncadd [#allocation5], %s46
      %s48 = sshll.u32 [#allocation4], 4
      %s49 = int_to_ptr.vmem [resolvable:$true] %s48
      %54 = dma.hbm_to_vmem [thread:$0]  %s8, 2048, %s49, [#allocation5], 128, 128, 8
    $region37: #{mlp_forward.1} parent=1 // pred_fallthru
      _
    // Predicated region
    $region38: #{mlp_forward.1} parent=1 // pred_check
      _
    $region39: #{mlp_forward.1} parent=1 // pred_check_branch
      %56 = sbr.rel (0) target = $region41
    $region40: #{mlp_forward.1} parent=1 // pred_region
      _
    $region41: #{mlp_forward.1} parent=1 // pred_fallthru
      _
    // Predicated region
    $region42: #{mlp_forward.1} parent=1 // pred_check
      _
    $region43: #{mlp_forward.1} parent=1 // pred_check_branch
      %58 = sbr.rel (0) target = $region45
    $region44: #{mlp_forward.1} parent=1 // pred_region
      %59 = dma.done [#allocation3], 24576
    $region45: #{mlp_forward.1} parent=1 // pred_fallthru
      _
    // Predicated region
    $region46: #{mlp_forward.1} parent=1 // pred_check
      _
    $region47: #{mlp_forward.1} parent=1 // pred_check_branch
      %61 = sbr.rel (0) target = $region49
    $region48: #{mlp_forward.1} parent=1 // pred_region
      %62 = dma.done [#allocation5], 2048
    $region49: #{mlp_forward.1} parent=1 // pred_fallthru
      _
    %v64 = vld [vmem:[%s0] sm:$0xff]
    %v65 = vld [vmem:[%s0 + $0x8] sm:$0xff]
    %v66 = vld [vmem:[%s0 + $0x10] sm:$0xff]
    %v67 = vld [vmem:[%s0 + $0x18] sm:$0xff]
    %v68 = vld [vmem:[%s0 + $0x20] sm:$0xff]
    %v69 = vld [vmem:[%s0 + $0x28] sm:$0xff]
    %v70 = vld [vmem:[%s0 + $0x30] sm:$0xff]
    %v71 = vld [vmem:[%s0 + $0x38] sm:$0xff]
    %v72 = vld [vmem:[%s0 + $0x40] sm:$0xff]
    %v73 = vld [vmem:[%s0 + $0x48] sm:$0xff]
    %v74 = vld [vmem:[%s0 + $0x50] sm:$0xff]
    %v75 = vld [vmem:[%s0 + $0x58] sm:$0xff]
    %v76 = vld [vmem:[#allocation2] sm:$0xf]
    %v77 = vld [vmem:[#allocation2 + $0x4] sm:$0xf]
    %v78 = vld [vmem:[#allocation2 + $0x8] sm:$0xf]
    %v79 = vld [vmem:[#allocation2 + $0xc] sm:$0xf]
    %v80 = vld [vmem:[#allocation2 + $0x10] sm:$0xf]
    %v81 = vld [vmem:[#allocation2 + $0x14] sm:$0xf]
    %v82 = vld [vmem:[#allocation2 + $0x18] sm:$0xf]
    %v83 = vld [vmem:[#allocation2 + $0x1c] sm:$0xf]
    %v84 = vld [vmem:[#allocation2 + $0x20] sm:$0xf]
    %v85 = vld [vmem:[#allocation2 + $0x24] sm:$0xf]
    %v86 = vld [vmem:[#allocation2 + $0x28] sm:$0xf]
    %v87 = vld [vmem:[#allocation2 + $0x2c] sm:$0xf]
    %v88 = vld [vmem:[#allocation2 + $0x30] sm:$0xf]
    %v89 = vld [vmem:[#allocation2 + $0x34] sm:$0xf]
    %v90 = vld [vmem:[#allocation2 + $0x38] sm:$0xf]
    %v91 = vld [vmem:[#allocation2 + $0x3c] sm:$0xf]
    %v92 = vld [vmem:[#allocation2 + $0x40] sm:$0xf]
    %v93 = vld [vmem:[#allocation2 + $0x44] sm:$0xf]
    %v94 = vld [vmem:[#allocation2 + $0x48] sm:$0xf]
    %v95 = vld [vmem:[#allocation2 + $0x4c] sm:$0xf]
    %v96 = vld [vmem:[#allocation2 + $0x50] sm:$0xf]
    %v97 = vld [vmem:[#allocation2 + $0x54] sm:$0xf]
    %v98 = vld [vmem:[#allocation2 + $0x58] sm:$0xf]
    %v99 = vld [vmem:[#allocation2 + $0x5c] sm:$0xf]
    %v100 = vld [vmem:[#allocation2 + $0x60] sm:$0xf]
    %v101 = vld [vmem:[#allocation2 + $0x64] sm:$0xf]
    %v102 = vld [vmem:[#allocation2 + $0x68] sm:$0xf]
    %v103 = vld [vmem:[#allocation2 + $0x6c] sm:$0xf]
    %v104 = vld [vmem:[#allocation2 + $0x70] sm:$0xf]
    %v105 = vld [vmem:[#allocation2 + $0x74] sm:$0xf]
    %v106 = vld [vmem:[#allocation2 + $0x78] sm:$0xf]
    %v107 = vld [vmem:[#allocation2 + $0x7c] sm:$0xf]
    %v108 = vld [vmem:[#allocation2 + $0x80] sm:$0xf]
    %v109 = vld [vmem:[#allocation2 + $0x84] sm:$0xf]
    %v110 = vld [vmem:[#allocation2 + $0x88] sm:$0xf]
    %v111 = vld [vmem:[#allocation2 + $0x8c] sm:$0xf]
    %v112 = vld [vmem:[#allocation2 + $0x90] sm:$0xf]
    %v113 = vld [vmem:[#allocation2 + $0x94] sm:$0xf]
    %v114 = vld [vmem:[#allocation2 + $0x98] sm:$0xf]
    %v115 = vld [vmem:[#allocation2 + $0x9c] sm:$0xf]
    %v116 = vld [vmem:[#allocation2 + $0xa0] sm:$0xf]
    %v117 = vld [vmem:[#allocation2 + $0xa4] sm:$0xf]
    %v118 = vld [vmem:[#allocation2 + $0xa8] sm:$0xf]
    %v119 = vld [vmem:[#allocation2 + $0xac] sm:$0xf]
    %v120 = vld [vmem:[#allocation2 + $0xb0] sm:$0xf]
    %v121 = vld [vmem:[#allocation2 + $0xb4] sm:$0xf]
    %v122 = vld [vmem:[#allocation2 + $0xb8] sm:$0xf]
    %v123 = vld [vmem:[#allocation2 + $0xbc] sm:$0xf]
    %v124 = vld [vmem:[#allocation2 + $0xc0] sm:$0xf]
    %v125 = vld [vmem:[#allocation2 + $0xc4] sm:$0xf]
    %v126 = vld [vmem:[#allocation2 + $0xc8] sm:$0xf]
    %v127 = vld [vmem:[#allocation2 + $0xcc] sm:$0xf]
    %v128 = vld [vmem:[#allocation2 + $0xd0] sm:$0xf]
    %v129 = vld [vmem:[#allocation2 + $0xd4] sm:$0xf]
    %v130 = vld [vmem:[#allocation2 + $0xd8] sm:$0xf]
    %v131 = vld [vmem:[#allocation2 + $0xdc] sm:$0xf]
    %v132 = vld [vmem:[#allocation2 + $0xe0] sm:$0xf]
    %v133 = vld [vmem:[#allocation2 + $0xe4] sm:$0xf]
    %v134 = vld [vmem:[#allocation2 + $0xe8] sm:$0xf]
    %v135 = vld [vmem:[#allocation2 + $0xec] sm:$0xf]
    %v136 = vld [vmem:[#allocation2 + $0xf0] sm:$0xf]
    %v137 = vld [vmem:[#allocation2 + $0xf4] sm:$0xf]
    %v138 = vld [vmem:[#allocation2 + $0xf8] sm:$0xf]
    %v139 = vld [vmem:[#allocation2 + $0xfc] sm:$0xf]
    %v140 = vld [vmem:[#allocation2 + $0x100] sm:$0xf]
    %v141 = vld [vmem:[#allocation2 + $0x104] sm:$0xf]
    %v142 = vld [vmem:[#allocation2 + $0x108] sm:$0xf]
    %v143 = vld [vmem:[#allocation2 + $0x10c] sm:$0xf]
    %v144 = vld [vmem:[#allocation2 + $0x110] sm:$0xf]
    %v145 = vld [vmem:[#allocation2 + $0x114] sm:$0xf]
    %v146 = vld [vmem:[#allocation2 + $0x118] sm:$0xf]
    %v147 = vld [vmem:[#allocation2 + $0x11c] sm:$0xf]
    %v148 = vld [vmem:[#allocation2 + $0x120] sm:$0xf]
    %v149 = vld [vmem:[#allocation2 + $0x124] sm:$0xf]
    %v150 = vld [vmem:[#allocation2 + $0x128] sm:$0xf]
    %v151 = vld [vmem:[#allocation2 + $0x12c] sm:$0xf]
    %v152 = vld [vmem:[#allocation2 + $0x130] sm:$0xf]
    %v153 = vld [vmem:[#allocation2 + $0x134] sm:$0xf]
    %v154 = vld [vmem:[#allocation2 + $0x138] sm:$0xf]
    %v155 = vld [vmem:[#allocation2 + $0x13c] sm:$0xf]
    %v156 = vld [vmem:[#allocation2 + $0x140] sm:$0xf]
    %v157 = vld [vmem:[#allocation2 + $0x144] sm:$0xf]
    %v158 = vld [vmem:[#allocation2 + $0x148] sm:$0xf]
    %v159 = vld [vmem:[#allocation2 + $0x14c] sm:$0xf]
    %v160 = vld [vmem:[#allocation2 + $0x150] sm:$0xf]
    %v161 = vld [vmem:[#allocation2 + $0x154] sm:$0xf]
    %v162 = vld [vmem:[#allocation2 + $0x158] sm:$0xf]
    %v163 = vld [vmem:[#allocation2 + $0x15c] sm:$0xf]
    %v164 = vld [vmem:[#allocation2 + $0x160] sm:$0xf]
    %v165 = vld [vmem:[#allocation2 + $0x164] sm:$0xf]
    %v166 = vld [vmem:[#allocation2 + $0x168] sm:$0xf]
    %v167 = vld [vmem:[#allocation2 + $0x16c] sm:$0xf]
    %v168 = vld [vmem:[#allocation2 + $0x170] sm:$0xf]
    %v169 = vld [vmem:[#allocation2 + $0x174] sm:$0xf]
    %v170 = vld [vmem:[#allocation2 + $0x178] sm:$0xf]
    %v171 = vld [vmem:[#allocation2 + $0x17c] sm:$0xf]
    %v172 = vld [vmem:[#allocation2 + $0x180] sm:$0xf]
    %v173 = vld [vmem:[#allocation2 + $0x184] sm:$0xf]
    %v174 = vld [vmem:[#allocation2 + $0x188] sm:$0xf]
    %v175 = vld [vmem:[#allocation2 + $0x18c] sm:$0xf]
    %v176 = vld [vmem:[#allocation2 + $0x190] sm:$0xf]
    %v177 = vld [vmem:[#allocation2 + $0x194] sm:$0xf]
    %v178 = vld [vmem:[#allocation2 + $0x198] sm:$0xf]
    %v179 = vld [vmem:[#allocation2 + $0x19c] sm:$0xf]
    %v180 = vld [vmem:[#allocation2 + $0x1a0] sm:$0xf]
    %v181 = vld [vmem:[#allocation2 + $0x1a4] sm:$0xf]
    %v182 = vld [vmem:[#allocation2 + $0x1a8] sm:$0xf]
    %v183 = vld [vmem:[#allocation2 + $0x1ac] sm:$0xf]
    %v184 = vld [vmem:[#allocation2 + $0x1b0] sm:$0xf]
    %v185 = vld [vmem:[#allocation2 + $0x1b4] sm:$0xf]
    %v186 = vld [vmem:[#allocation2 + $0x1b8] sm:$0xf]
    %v187 = vld [vmem:[#allocation2 + $0x1bc] sm:$0xf]
    %v188 = vld [vmem:[#allocation2 + $0x1c0] sm:$0xf]
    %v189 = vld [vmem:[#allocation2 + $0x1c4] sm:$0xf]
    %v190 = vld [vmem:[#allocation2 + $0x1c8] sm:$0xf]
    %v191 = vld [vmem:[#allocation2 + $0x1cc] sm:$0xf]
    %v192 = vld [vmem:[#allocation2 + $0x1d0] sm:$0xf]
    %v193 = vld [vmem:[#allocation2 + $0x1d4] sm:$0xf]
    %v194 = vld [vmem:[#allocation2 + $0x1d8] sm:$0xf]
    %v195 = vld [vmem:[#allocation2 + $0x1dc] sm:$0xf]
    %v196 = vld [vmem:[#allocation2 + $0x1e0] sm:$0xf]
    %v197 = vld [vmem:[#allocation2 + $0x1e4] sm:$0xf]
    %v198 = vld [vmem:[#allocation2 + $0x1e8] sm:$0xf]
    %v199 = vld [vmem:[#allocation2 + $0x1ec] sm:$0xf]
    %v200 = vld [vmem:[#allocation2 + $0x1f0] sm:$0xf]
    %v201 = vld [vmem:[#allocation2 + $0x1f4] sm:$0xf]
    %v202 = vld [vmem:[#allocation2 + $0x1f8] sm:$0xf]
    %v203 = vld [vmem:[#allocation2 + $0x1fc] sm:$0xf]
    %v204 = vld [vmem:[#allocation2 + $0x200] sm:$0xf]
    %v205 = vld [vmem:[#allocation2 + $0x204] sm:$0xf]
    %v206 = vld [vmem:[#allocation2 + $0x208] sm:$0xf]
    %v207 = vld [vmem:[#allocation2 + $0x20c] sm:$0xf]
    %v208 = vld [vmem:[#allocation2 + $0x210] sm:$0xf]
    %v209 = vld [vmem:[#allocation2 + $0x214] sm:$0xf]
    %v210 = vld [vmem:[#allocation2 + $0x218] sm:$0xf]
    %v211 = vld [vmem:[#allocation2 + $0x21c] sm:$0xf]
    %v212 = vld [vmem:[#allocation2 + $0x220] sm:$0xf]
    %v213 = vld [vmem:[#allocation2 + $0x224] sm:$0xf]
    %v214 = vld [vmem:[#allocation2 + $0x228] sm:$0xf]
    %v215 = vld [vmem:[#allocation2 + $0x22c] sm:$0xf]
    %v216 = vld [vmem:[#allocation2 + $0x230] sm:$0xf]
    %v217 = vld [vmem:[#allocation2 + $0x234] sm:$0xf]
    %v218 = vld [vmem:[#allocation2 + $0x238] sm:$0xf]
    %v219 = vld [vmem:[#allocation2 + $0x23c] sm:$0xf]
    %v220 = vld [vmem:[#allocation2 + $0x240] sm:$0xf]
    %v221 = vld [vmem:[#allocation2 + $0x244] sm:$0xf]
    %v222 = vld [vmem:[#allocation2 + $0x248] sm:$0xf]
    %v223 = vld [vmem:[#allocation2 + $0x24c] sm:$0xf]
    %v224 = vld [vmem:[#allocation2 + $0x250] sm:$0xf]
    %v225 = vld [vmem:[#allocation2 + $0x254] sm:$0xf]
    %v226 = vld [vmem:[#allocation2 + $0x258] sm:$0xf]
    %v227 = vld [vmem:[#allocation2 + $0x25c] sm:$0xf]
    %v228 = vld [vmem:[#allocation2 + $0x260] sm:$0xf]
    %v229 = vld [vmem:[#allocation2 + $0x264] sm:$0xf]
    %v230 = vld [vmem:[#allocation2 + $0x268] sm:$0xf]
    %v231 = vld [vmem:[#allocation2 + $0x26c] sm:$0xf]
    %v232 = vld [vmem:[#allocation2 + $0x270] sm:$0xf]
    %v233 = vld [vmem:[#allocation2 + $0x274] sm:$0xf]
    %v234 = vld [vmem:[#allocation2 + $0x278] sm:$0xf]
    %v235 = vld [vmem:[#allocation2 + $0x27c] sm:$0xf]
    %v236 = vld [vmem:[#allocation2 + $0x280] sm:$0xf]
    %v237 = vld [vmem:[#allocation2 + $0x284] sm:$0xf]
    %v238 = vld [vmem:[#allocation2 + $0x288] sm:$0xf]
    %v239 = vld [vmem:[#allocation2 + $0x28c] sm:$0xf]
    %v240 = vld [vmem:[#allocation2 + $0x290] sm:$0xf]
    %v241 = vld [vmem:[#allocation2 + $0x294] sm:$0xf]
    %v242 = vld [vmem:[#allocation2 + $0x298] sm:$0xf]
    %v243 = vld [vmem:[#allocation2 + $0x29c] sm:$0xf]
    %v244 = vld [vmem:[#allocation2 + $0x2a0] sm:$0xf]
    %v245 = vld [vmem:[#allocation2 + $0x2a4] sm:$0xf]
    %v246 = vld [vmem:[#allocation2 + $0x2a8] sm:$0xf]
    %v247 = vld [vmem:[#allocation2 + $0x2ac] sm:$0xf]
    %v248 = vld [vmem:[#allocation2 + $0x2b0] sm:$0xf]
    %v249 = vld [vmem:[#allocation2 + $0x2b4] sm:$0xf]
    %v250 = vld [vmem:[#allocation2 + $0x2b8] sm:$0xf]
    %v251 = vld [vmem:[#allocation2 + $0x2bc] sm:$0xf]
    %v252 = vld [vmem:[#allocation2 + $0x2c0] sm:$0xf]
    %v253 = vld [vmem:[#allocation2 + $0x2c4] sm:$0xf]
    %v254 = vld [vmem:[#allocation2 + $0x2c8] sm:$0xf]
    %v255 = vld [vmem:[#allocation2 + $0x2cc] sm:$0xf]
    %v256 = vld [vmem:[#allocation2 + $0x2d0] sm:$0xf]
    %v257 = vld [vmem:[#allocation2 + $0x2d4] sm:$0xf]
    %v258 = vld [vmem:[#allocation2 + $0x2d8] sm:$0xf]
    %v259 = vld [vmem:[#allocation2 + $0x2dc] sm:$0xf]
    %v260 = vld [vmem:[#allocation2 + $0x2e0] sm:$0xf]
    %v261 = vld [vmem:[#allocation2 + $0x2e4] sm:$0xf]
    %v262 = vld [vmem:[#allocation2 + $0x2e8] sm:$0xf]
    %v263 = vld [vmem:[#allocation2 + $0x2ec] sm:$0xf]
    %v264 = vld [vmem:[#allocation2 + $0x2f0] sm:$0xf]
    %v265 = vld [vmem:[#allocation2 + $0x2f4] sm:$0xf]
    %v266 = vld [vmem:[#allocation2 + $0x2f8] sm:$0xf]
    %v267 = vld [vmem:[#allocation2 + $0x2fc] sm:$0xf]
    %v268 = vld [vmem:[#allocation2 + $0x300] sm:$0xf]
    %v269 = vld [vmem:[#allocation2 + $0x304] sm:$0xf]
    %v270 = vld [vmem:[#allocation2 + $0x308] sm:$0xf]
    %v271 = vld [vmem:[#allocation2 + $0x30c] sm:$0xf]
    %v272 = vld [vmem:[#allocation2 + $0x310] sm:$0xf]
    %v273 = vld [vmem:[#allocation2 + $0x314] sm:$0xf]
    %v274 = vld [vmem:[#allocation2 + $0x318] sm:$0xf]
    %v275 = vld [vmem:[#allocation2 + $0x31c] sm:$0xf]
    %v276 = vld [vmem:[#allocation2 + $0x320] sm:$0xf]
    %v277 = vld [vmem:[#allocation2 + $0x324] sm:$0xf]
    %v278 = vld [vmem:[#allocation2 + $0x328] sm:$0xf]
    %v279 = vld [vmem:[#allocation2 + $0x32c] sm:$0xf]
    %v280 = vld [vmem:[#allocation2 + $0x330] sm:$0xf]
    %v281 = vld [vmem:[#allocation2 + $0x334] sm:$0xf]
    %v282 = vld [vmem:[#allocation2 + $0x338] sm:$0xf]
    %v283 = vld [vmem:[#allocation2 + $0x33c] sm:$0xf]
    %v284 = vld [vmem:[#allocation2 + $0x340] sm:$0xf]
    %v285 = vld [vmem:[#allocation2 + $0x344] sm:$0xf]
    %v286 = vld [vmem:[#allocation2 + $0x348] sm:$0xf]
    %v287 = vld [vmem:[#allocation2 + $0x34c] sm:$0xf]
    %v288 = vld [vmem:[#allocation2 + $0x350] sm:$0xf]
    %v289 = vld [vmem:[#allocation2 + $0x354] sm:$0xf]
    %v290 = vld [vmem:[#allocation2 + $0x358] sm:$0xf]
    %v291 = vld [vmem:[#allocation2 + $0x35c] sm:$0xf]
    %v292 = vld [vmem:[#allocation2 + $0x360] sm:$0xf]
    %v293 = vld [vmem:[#allocation2 + $0x364] sm:$0xf]
    %v294 = vld [vmem:[#allocation2 + $0x368] sm:$0xf]
    %v295 = vld [vmem:[#allocation2 + $0x36c] sm:$0xf]
    %v296 = vld [vmem:[#allocation2 + $0x370] sm:$0xf]
    %v297 = vld [vmem:[#allocation2 + $0x374] sm:$0xf]
    %v298 = vld [vmem:[#allocation2 + $0x378] sm:$0xf]
    %v299 = vld [vmem:[#allocation2 + $0x37c] sm:$0xf]
    %v300 = vld [vmem:[#allocation2 + $0x380] sm:$0xf]
    %v301 = vld [vmem:[#allocation2 + $0x384] sm:$0xf]
    %v302 = vld [vmem:[#allocation2 + $0x388] sm:$0xf]
    %v303 = vld [vmem:[#allocation2 + $0x38c] sm:$0xf]
    %v304 = vld [vmem:[#allocation2 + $0x390] sm:$0xf]
    %v305 = vld [vmem:[#allocation2 + $0x394] sm:$0xf]
    %v306 = vld [vmem:[#allocation2 + $0x398] sm:$0xf]
    %v307 = vld [vmem:[#allocation2 + $0x39c] sm:$0xf]
    %v308 = vld [vmem:[#allocation2 + $0x3a0] sm:$0xf]
    %v309 = vld [vmem:[#allocation2 + $0x3a4] sm:$0xf]
    %v310 = vld [vmem:[#allocation2 + $0x3a8] sm:$0xf]
    %v311 = vld [vmem:[#allocation2 + $0x3ac] sm:$0xf]
    %v312 = vld [vmem:[#allocation2 + $0x3b0] sm:$0xf]
    %v313 = vld [vmem:[#allocation2 + $0x3b4] sm:$0xf]
    %v314 = vld [vmem:[#allocation2 + $0x3b8] sm:$0xf]
    %v315 = vld [vmem:[#allocation2 + $0x3bc] sm:$0xf]
    %v316 = vld [vmem:[#allocation2 + $0x3c0] sm:$0xf]
    %v317 = vld [vmem:[#allocation2 + $0x3c4] sm:$0xf]
    %v318 = vld [vmem:[#allocation2 + $0x3c8] sm:$0xf]
    %v319 = vld [vmem:[#allocation2 + $0x3cc] sm:$0xf]
    %v320 = vld [vmem:[#allocation2 + $0x3d0] sm:$0xf]
    %v321 = vld [vmem:[#allocation2 + $0x3d4] sm:$0xf]
    %v322 = vld [vmem:[#allocation2 + $0x3d8] sm:$0xf]
    %v323 = vld [vmem:[#allocation2 + $0x3dc] sm:$0xf]
    %v324 = vld [vmem:[#allocation2 + $0x3e0] sm:$0xf]
    %v325 = vld [vmem:[#allocation2 + $0x3e4] sm:$0xf]
    %v326 = vld [vmem:[#allocation2 + $0x3e8] sm:$0xf]
    %v327 = vld [vmem:[#allocation2 + $0x3ec] sm:$0xf]
    %v328 = vld [vmem:[#allocation2 + $0x3f0] sm:$0xf]
    %v329 = vld [vmem:[#allocation2 + $0x3f4] sm:$0xf]
    %v330 = vld [vmem:[#allocation2 + $0x3f8] sm:$0xf]
    %v331 = vld [vmem:[#allocation2 + $0x3fc] sm:$0xf]
    %v332 = vld [vmem:[#allocation2 + $0x400] sm:$0xf]
    %v333 = vld [vmem:[#allocation2 + $0x404] sm:$0xf]
    %v334 = vld [vmem:[#allocation2 + $0x408] sm:$0xf]
    %v335 = vld [vmem:[#allocation2 + $0x40c] sm:$0xf]
    %v336 = vld [vmem:[#allocation2 + $0x410] sm:$0xf]
    %v337 = vld [vmem:[#allocation2 + $0x414] sm:$0xf]
    %v338 = vld [vmem:[#allocation2 + $0x418] sm:$0xf]
    %v339 = vld [vmem:[#allocation2 + $0x41c] sm:$0xf]
    %v340 = vld [vmem:[#allocation2 + $0x420] sm:$0xf]
    %v341 = vld [vmem:[#allocation2 + $0x424] sm:$0xf]
    %v342 = vld [vmem:[#allocation2 + $0x428] sm:$0xf]
    %v343 = vld [vmem:[#allocation2 + $0x42c] sm:$0xf]
    %v344 = vld [vmem:[#allocation2 + $0x430] sm:$0xf]
    %v345 = vld [vmem:[#allocation2 + $0x434] sm:$0xf]
    %v346 = vld [vmem:[#allocation2 + $0x438] sm:$0xf]
    %v347 = vld [vmem:[#allocation2 + $0x43c] sm:$0xf]
    %v348 = vld [vmem:[#allocation2 + $0x440] sm:$0xf]
    %v349 = vld [vmem:[#allocation2 + $0x444] sm:$0xf]
    %v350 = vld [vmem:[#allocation2 + $0x448] sm:$0xf]
    %v351 = vld [vmem:[#allocation2 + $0x44c] sm:$0xf]
    %v352 = vld [vmem:[#allocation2 + $0x450] sm:$0xf]
    %v353 = vld [vmem:[#allocation2 + $0x454] sm:$0xf]
    %v354 = vld [vmem:[#allocation2 + $0x458] sm:$0xf]
    %v355 = vld [vmem:[#allocation2 + $0x45c] sm:$0xf]
    %v356 = vld [vmem:[#allocation2 + $0x460] sm:$0xf]
    %v357 = vld [vmem:[#allocation2 + $0x464] sm:$0xf]
    %v358 = vld [vmem:[#allocation2 + $0x468] sm:$0xf]
    %v359 = vld [vmem:[#allocation2 + $0x46c] sm:$0xf]
    %v360 = vld [vmem:[#allocation2 + $0x470] sm:$0xf]
    %v361 = vld [vmem:[#allocation2 + $0x474] sm:$0xf]
    %v362 = vld [vmem:[#allocation2 + $0x478] sm:$0xf]
    %v363 = vld [vmem:[#allocation2 + $0x47c] sm:$0xf]
    %v364 = vld [vmem:[#allocation2 + $0x480] sm:$0xf]
    %v365 = vld [vmem:[#allocation2 + $0x484] sm:$0xf]
    %v366 = vld [vmem:[#allocation2 + $0x488] sm:$0xf]
    %v367 = vld [vmem:[#allocation2 + $0x48c] sm:$0xf]
    %v368 = vld [vmem:[#allocation2 + $0x490] sm:$0xf]
    %v369 = vld [vmem:[#allocation2 + $0x494] sm:$0xf]
    %v370 = vld [vmem:[#allocation2 + $0x498] sm:$0xf]
    %v371 = vld [vmem:[#allocation2 + $0x49c] sm:$0xf]
    %v372 = vld [vmem:[#allocation2 + $0x4a0] sm:$0xf]
    %v373 = vld [vmem:[#allocation2 + $0x4a4] sm:$0xf]
    %v374 = vld [vmem:[#allocation2 + $0x4a8] sm:$0xf]
    %v375 = vld [vmem:[#allocation2 + $0x4ac] sm:$0xf]
    %v376 = vld [vmem:[#allocation2 + $0x4b0] sm:$0xf]
    %v377 = vld [vmem:[#allocation2 + $0x4b4] sm:$0xf]
    %v378 = vld [vmem:[#allocation2 + $0x4b8] sm:$0xf]
    %v379 = vld [vmem:[#allocation2 + $0x4bc] sm:$0xf]
    %v380 = vld [vmem:[#allocation2 + $0x4c0] sm:$0xf]
    %v381 = vld [vmem:[#allocation2 + $0x4c4] sm:$0xf]
    %v382 = vld [vmem:[#allocation2 + $0x4c8] sm:$0xf]
    %v383 = vld [vmem:[#allocation2 + $0x4cc] sm:$0xf]
    %v384 = vld [vmem:[#allocation2 + $0x4d0] sm:$0xf]
    %v385 = vld [vmem:[#allocation2 + $0x4d4] sm:$0xf]
    %v386 = vld [vmem:[#allocation2 + $0x4d8] sm:$0xf]
    %v387 = vld [vmem:[#allocation2 + $0x4dc] sm:$0xf]
    %v388 = vld [vmem:[#allocation2 + $0x4e0] sm:$0xf]
    %v389 = vld [vmem:[#allocation2 + $0x4e4] sm:$0xf]
    %v390 = vld [vmem:[#allocation2 + $0x4e8] sm:$0xf]
    %v391 = vld [vmem:[#allocation2 + $0x4ec] sm:$0xf]
    %v392 = vld [vmem:[#allocation2 + $0x4f0] sm:$0xf]
    %v393 = vld [vmem:[#allocation2 + $0x4f4] sm:$0xf]
    %v394 = vld [vmem:[#allocation2 + $0x4f8] sm:$0xf]
    %v395 = vld [vmem:[#allocation2 + $0x4fc] sm:$0xf]
    %v396 = vld [vmem:[#allocation2 + $0x500] sm:$0xf]
    %v397 = vld [vmem:[#allocation2 + $0x504] sm:$0xf]
    %v398 = vld [vmem:[#allocation2 + $0x508] sm:$0xf]
    %v399 = vld [vmem:[#allocation2 + $0x50c] sm:$0xf]
    %v400 = vld [vmem:[#allocation2 + $0x510] sm:$0xf]
    %v401 = vld [vmem:[#allocation2 + $0x514] sm:$0xf]
    %v402 = vld [vmem:[#allocation2 + $0x518] sm:$0xf]
    %v403 = vld [vmem:[#allocation2 + $0x51c] sm:$0xf]
    %v404 = vld [vmem:[#allocation2 + $0x520] sm:$0xf]
    %v405 = vld [vmem:[#allocation2 + $0x524] sm:$0xf]
    %v406 = vld [vmem:[#allocation2 + $0x528] sm:$0xf]
    %v407 = vld [vmem:[#allocation2 + $0x52c] sm:$0xf]
    %v408 = vld [vmem:[#allocation2 + $0x530] sm:$0xf]
    %v409 = vld [vmem:[#allocation2 + $0x534] sm:$0xf]
    %v410 = vld [vmem:[#allocation2 + $0x538] sm:$0xf]
    %v411 = vld [vmem:[#allocation2 + $0x53c] sm:$0xf]
    %v412 = vld [vmem:[#allocation2 + $0x540] sm:$0xf]
    %v413 = vld [vmem:[#allocation2 + $0x544] sm:$0xf]
    %v414 = vld [vmem:[#allocation2 + $0x548] sm:$0xf]
    %v415 = vld [vmem:[#allocation2 + $0x54c] sm:$0xf]
    %v416 = vld [vmem:[#allocation2 + $0x550] sm:$0xf]
    %v417 = vld [vmem:[#allocation2 + $0x554] sm:$0xf]
    %v418 = vld [vmem:[#allocation2 + $0x558] sm:$0xf]
    %v419 = vld [vmem:[#allocation2 + $0x55c] sm:$0xf]
    %v420 = vld [vmem:[#allocation2 + $0x560] sm:$0xf]
    %v421 = vld [vmem:[#allocation2 + $0x564] sm:$0xf]
    %v422 = vld [vmem:[#allocation2 + $0x568] sm:$0xf]
    %v423 = vld [vmem:[#allocation2 + $0x56c] sm:$0xf]
    %v424 = vld [vmem:[#allocation2 + $0x570] sm:$0xf]
    %v425 = vld [vmem:[#allocation2 + $0x574] sm:$0xf]
    %v426 = vld [vmem:[#allocation2 + $0x578] sm:$0xf]
    %v427 = vld [vmem:[#allocation2 + $0x57c] sm:$0xf]
    %v428 = vld [vmem:[#allocation2 + $0x580] sm:$0xf]
    %v429 = vld [vmem:[#allocation2 + $0x584] sm:$0xf]
    %v430 = vld [vmem:[#allocation2 + $0x588] sm:$0xf]
    %v431 = vld [vmem:[#allocation2 + $0x58c] sm:$0xf]
    %v432 = vld [vmem:[#allocation2 + $0x590] sm:$0xf]
    %v433 = vld [vmem:[#allocation2 + $0x594] sm:$0xf]
    %v434 = vld [vmem:[#allocation2 + $0x598] sm:$0xf]
    %v435 = vld [vmem:[#allocation2 + $0x59c] sm:$0xf]
    %v436 = vld [vmem:[#allocation2 + $0x5a0] sm:$0xf]
    %v437 = vld [vmem:[#allocation2 + $0x5a4] sm:$0xf]
    %v438 = vld [vmem:[#allocation2 + $0x5a8] sm:$0xf]
    %v439 = vld [vmem:[#allocation2 + $0x5ac] sm:$0xf]
    %v440 = vld [vmem:[#allocation2 + $0x5b0] sm:$0xf]
    %v441 = vld [vmem:[#allocation2 + $0x5b4] sm:$0xf]
    %v442 = vld [vmem:[#allocation2 + $0x5b8] sm:$0xf]
    %v443 = vld [vmem:[#allocation2 + $0x5bc] sm:$0xf]
    %v444 = vld [vmem:[#allocation2 + $0x5c0] sm:$0xf]
    %v445 = vld [vmem:[#allocation2 + $0x5c4] sm:$0xf]
    %v446 = vld [vmem:[#allocation2 + $0x5c8] sm:$0xf]
    %v447 = vld [vmem:[#allocation2 + $0x5cc] sm:$0xf]
    %v448 = vld [vmem:[#allocation2 + $0x5d0] sm:$0xf]
    %v449 = vld [vmem:[#allocation2 + $0x5d4] sm:$0xf]
    %v450 = vld [vmem:[#allocation2 + $0x5d8] sm:$0xf]
    %v451 = vld [vmem:[#allocation2 + $0x5dc] sm:$0xf]
    %v452 = vld [vmem:[#allocation2 + $0x5e0] sm:$0xf]
    %v453 = vld [vmem:[#allocation2 + $0x5e4] sm:$0xf]
    %v454 = vld [vmem:[#allocation2 + $0x5e8] sm:$0xf]
    %v455 = vld [vmem:[#allocation2 + $0x5ec] sm:$0xf]
    %v456 = vld [vmem:[#allocation2 + $0x5f0] sm:$0xf]
    %v457 = vld [vmem:[#allocation2 + $0x5f4] sm:$0xf]
    %v458 = vld [vmem:[#allocation2 + $0x5f8] sm:$0xf]
    %v459 = vld [vmem:[#allocation2 + $0x5fc] sm:$0xf]
    %v460 = vld [vmem:[%s3] sm:$0x1]
    %v462 = vlaneseq
    %v463 = vshrl.u32 %v462, 7
    %v464 = vsub.s32 0, %v463
    %v465 = vrot.slane %v460, %v464
    %v479 = vunpack.c.l.b16 %v64
    %v480 = vunpack.c.h.b16 %v64
    %v481 = vunpack.c.l.b16 %v65
    %v482 = vunpack.c.h.b16 %v65
    %v483 = vunpack.c.l.b16 %v66
    %v484 = vunpack.c.h.b16 %v66
    %v485 = vunpack.c.l.b16 %v67
    %v486 = vunpack.c.h.b16 %v67
    %v487 = vunpack.c.l.b16 %v68
    %v488 = vunpack.c.h.b16 %v68
    %v489 = vunpack.c.l.b16 %v69
    %v490 = vunpack.c.h.b16 %v69
    %v491 = vunpack.c.l.b16 %v70
    %v492 = vunpack.c.h.b16 %v70
    %v493 = vunpack.c.l.b16 %v71
    %v494 = vunpack.c.h.b16 %v71
    %v495 = vunpack.c.l.b16 %v72
    %v496 = vunpack.c.h.b16 %v72
    %v497 = vunpack.c.l.b16 %v73
    %v498 = vunpack.c.h.b16 %v73
    %v499 = vunpack.c.l.b16 %v74
    %v500 = vunpack.c.h.b16 %v74
    %v501 = vunpack.c.l.b16 %v75
    %v502 = vunpack.c.h.b16 %v75
    %v503 = vpack.c.b16 %v479, %v479
    %v504 = vpack.c.b16 %v480, %v480
    %v505 = vpack.c.b16 %v481, %v481
    %v506 = vpack.c.b16 %v482, %v482
    %v507 = vpack.c.b16 %v483, %v483
    %v508 = vpack.c.b16 %v484, %v484
    %v509 = vpack.c.b16 %v485, %v485
    %v510 = vpack.c.b16 %v486, %v486
    %v511 = vpack.c.b16 %v487, %v487
    %v512 = vpack.c.b16 %v488, %v488
    %v513 = vpack.c.b16 %v489, %v489
    %v514 = vpack.c.b16 %v490, %v490
    %v515 = vpack.c.b16 %v491, %v491
    %v516 = vpack.c.b16 %v492, %v492
    %v517 = vpack.c.b16 %v493, %v493
    %v518 = vpack.c.b16 %v494, %v494
    %v519 = vpack.c.b16 %v495, %v495
    %v520 = vpack.c.b16 %v496, %v496
    %v521 = vpack.c.b16 %v497, %v497
    %v522 = vpack.c.b16 %v498, %v498
    %v523 = vpack.c.b16 %v499, %v499
    %v524 = vpack.c.b16 %v500, %v500
    %v525 = vpack.c.b16 %v501, %v501
    %v526 = vpack.c.b16 %v502, %v502
    %v935 = vunpack.c.l.b16 %v76
    %v936 = vunpack.c.l.b16 %v77
    %v937 = vunpack.c.l.b16 %v78
    %v938 = vunpack.c.l.b16 %v79
    %v939 = vunpack.c.l.b16 %v80
    %v940 = vunpack.c.l.b16 %v81
    %v941 = vunpack.c.l.b16 %v82
    %v942 = vunpack.c.l.b16 %v83
    %v943 = vunpack.c.l.b16 %v84
    %v944 = vunpack.c.l.b16 %v85
    %v945 = vunpack.c.l.b16 %v86
    %v946 = vunpack.c.l.b16 %v87
    %v947 = vunpack.c.l.b16 %v88
    %v948 = vunpack.c.l.b16 %v89
    %v949 = vunpack.c.l.b16 %v90
    %v950 = vunpack.c.l.b16 %v91
    %v951 = vunpack.c.l.b16 %v92
    %v952 = vunpack.c.l.b16 %v93
    %v953 = vunpack.c.l.b16 %v94
    %v954 = vunpack.c.l.b16 %v95
    %v955 = vunpack.c.l.b16 %v96
    %v956 = vunpack.c.l.b16 %v97
    %v957 = vunpack.c.l.b16 %v98
    %v958 = vunpack.c.l.b16 %v99
    %v959 = vunpack.c.l.b16 %v100
    %v960 = vunpack.c.l.b16 %v101
    %v961 = vunpack.c.l.b16 %v102
    %v962 = vunpack.c.l.b16 %v103
    %v963 = vunpack.c.l.b16 %v104
    %v964 = vunpack.c.l.b16 %v105
    %v965 = vunpack.c.l.b16 %v106
    %v966 = vunpack.c.l.b16 %v107
    %v967 = vunpack.c.l.b16 %v108
    %v968 = vunpack.c.l.b16 %v109
    %v969 = vunpack.c.l.b16 %v110
    %v970 = vunpack.c.l.b16 %v111
    %v971 = vunpack.c.l.b16 %v112
    %v972 = vunpack.c.l.b16 %v113
    %v973 = vunpack.c.l.b16 %v114
    %v974 = vunpack.c.l.b16 %v115
    %v975 = vunpack.c.l.b16 %v116
    %v976 = vunpack.c.l.b16 %v117
    %v977 = vunpack.c.l.b16 %v118
    %v978 = vunpack.c.l.b16 %v119
    %v979 = vunpack.c.l.b16 %v120
    %v980 = vunpack.c.l.b16 %v121
    %v981 = vunpack.c.l.b16 %v122
    %v982 = vunpack.c.l.b16 %v123
    %v983 = vunpack.c.l.b16 %v124
    %v984 = vunpack.c.l.b16 %v125
    %v985 = vunpack.c.l.b16 %v126
    %v986 = vunpack.c.l.b16 %v127
    %v987 = vunpack.c.l.b16 %v128
    %v988 = vunpack.c.l.b16 %v129
    %v989 = vunpack.c.l.b16 %v130
    %v990 = vunpack.c.l.b16 %v131
    %v991 = vunpack.c.l.b16 %v132
    %v992 = vunpack.c.l.b16 %v133
    %v993 = vunpack.c.l.b16 %v134
    %v994 = vunpack.c.l.b16 %v135
    %v995 = vunpack.c.l.b16 %v136
    %v996 = vunpack.c.l.b16 %v137
    %v997 = vunpack.c.l.b16 %v138
    %v998 = vunpack.c.l.b16 %v139
    %v999 = vunpack.c.l.b16 %v140
    %v1000 = vunpack.c.l.b16 %v141
    %v1001 = vunpack.c.l.b16 %v142
    %v1002 = vunpack.c.l.b16 %v143
    %v1003 = vunpack.c.l.b16 %v144
    %v1004 = vunpack.c.l.b16 %v145
    %v1005 = vunpack.c.l.b16 %v146
    %v1006 = vunpack.c.l.b16 %v147
    %v1007 = vunpack.c.l.b16 %v148
    %v1008 = vunpack.c.l.b16 %v149
    %v1009 = vunpack.c.l.b16 %v150
    %v1010 = vunpack.c.l.b16 %v151
    %v1011 = vunpack.c.l.b16 %v152
    %v1012 = vunpack.c.l.b16 %v153
    %v1013 = vunpack.c.l.b16 %v154
    %v1014 = vunpack.c.l.b16 %v155
    %v1015 = vunpack.c.l.b16 %v156
    %v1016 = vunpack.c.l.b16 %v157
    %v1017 = vunpack.c.l.b16 %v158
    %v1018 = vunpack.c.l.b16 %v159
    %v1019 = vunpack.c.l.b16 %v160
    %v1020 = vunpack.c.l.b16 %v161
    %v1021 = vunpack.c.l.b16 %v162
    %v1022 = vunpack.c.l.b16 %v163
    %v1023 = vunpack.c.l.b16 %v164
    %v1024 = vunpack.c.l.b16 %v165
    %v1025 = vunpack.c.l.b16 %v166
    %v1026 = vunpack.c.l.b16 %v167
    %v1027 = vunpack.c.l.b16 %v168
    %v1028 = vunpack.c.l.b16 %v169
    %v1029 = vunpack.c.l.b16 %v170
    %v1030 = vunpack.c.l.b16 %v171
    %v1031 = vunpack.c.l.b16 %v172
    %v1032 = vunpack.c.l.b16 %v173
    %v1033 = vunpack.c.l.b16 %v174
    %v1034 = vunpack.c.l.b16 %v175
    %v1035 = vunpack.c.l.b16 %v176
    %v1036 = vunpack.c.l.b16 %v177
    %v1037 = vunpack.c.l.b16 %v178
    %v1038 = vunpack.c.l.b16 %v179
    %v1039 = vunpack.c.l.b16 %v180
    %v1040 = vunpack.c.l.b16 %v181
    %v1041 = vunpack.c.l.b16 %v182
    %v1042 = vunpack.c.l.b16 %v183
    %v1043 = vunpack.c.l.b16 %v184
    %v1044 = vunpack.c.l.b16 %v185
    %v1045 = vunpack.c.l.b16 %v186
    %v1046 = vunpack.c.l.b16 %v187
    %v1047 = vunpack.c.l.b16 %v188
    %v1048 = vunpack.c.l.b16 %v189
    %v1049 = vunpack.c.l.b16 %v190
    %v1050 = vunpack.c.l.b16 %v191
    %v1051 = vunpack.c.l.b16 %v192
    %v1052 = vunpack.c.l.b16 %v193
    %v1053 = vunpack.c.l.b16 %v194
    %v1054 = vunpack.c.l.b16 %v195
    %v1055 = vunpack.c.l.b16 %v196
    %v1056 = vunpack.c.l.b16 %v197
    %v1057 = vunpack.c.l.b16 %v198
    %v1058 = vunpack.c.l.b16 %v199
    %v1059 = vunpack.c.l.b16 %v200
    %v1060 = vunpack.c.l.b16 %v201
    %v1061 = vunpack.c.l.b16 %v202
    %v1062 = vunpack.c.l.b16 %v203
    %v1063 = vunpack.c.l.b16 %v204
    %v1064 = vunpack.c.l.b16 %v205
    %v1065 = vunpack.c.l.b16 %v206
    %v1066 = vunpack.c.l.b16 %v207
    %v1067 = vunpack.c.l.b16 %v208
    %v1068 = vunpack.c.l.b16 %v209
    %v1069 = vunpack.c.l.b16 %v210
    %v1070 = vunpack.c.l.b16 %v211
    %v1071 = vunpack.c.l.b16 %v212
    %v1072 = vunpack.c.l.b16 %v213
    %v1073 = vunpack.c.l.b16 %v214
    %v1074 = vunpack.c.l.b16 %v215
    %v1075 = vunpack.c.l.b16 %v216
    %v1076 = vunpack.c.l.b16 %v217
    %v1077 = vunpack.c.l.b16 %v218
    %v1078 = vunpack.c.l.b16 %v219
    %v1079 = vunpack.c.l.b16 %v220
    %v1080 = vunpack.c.l.b16 %v221
    %v1081 = vunpack.c.l.b16 %v222
    %v1082 = vunpack.c.l.b16 %v223
    %v1083 = vunpack.c.l.b16 %v224
    %v1084 = vunpack.c.l.b16 %v225
    %v1085 = vunpack.c.l.b16 %v226
    %v1086 = vunpack.c.l.b16 %v227
    %v1087 = vunpack.c.l.b16 %v228
    %v1088 = vunpack.c.l.b16 %v229
    %v1089 = vunpack.c.l.b16 %v230
    %v1090 = vunpack.c.l.b16 %v231
    %v1091 = vunpack.c.l.b16 %v232
    %v1092 = vunpack.c.l.b16 %v233
    %v1093 = vunpack.c.l.b16 %v234
    %v1094 = vunpack.c.l.b16 %v235
    %v1095 = vunpack.c.l.b16 %v236
    %v1096 = vunpack.c.l.b16 %v237
    %v1097 = vunpack.c.l.b16 %v238
    %v1098 = vunpack.c.l.b16 %v239
    %v1099 = vunpack.c.l.b16 %v240
    %v1100 = vunpack.c.l.b16 %v241
    %v1101 = vunpack.c.l.b16 %v242
    %v1102 = vunpack.c.l.b16 %v243
    %v1103 = vunpack.c.l.b16 %v244
    %v1104 = vunpack.c.l.b16 %v245
    %v1105 = vunpack.c.l.b16 %v246
    %v1106 = vunpack.c.l.b16 %v247
    %v1107 = vunpack.c.l.b16 %v248
    %v1108 = vunpack.c.l.b16 %v249
    %v1109 = vunpack.c.l.b16 %v250
    %v1110 = vunpack.c.l.b16 %v251
    %v1111 = vunpack.c.l.b16 %v252
    %v1112 = vunpack.c.l.b16 %v253
    %v1113 = vunpack.c.l.b16 %v254
    %v1114 = vunpack.c.l.b16 %v255
    %v1115 = vunpack.c.l.b16 %v256
    %v1116 = vunpack.c.l.b16 %v257
    %v1117 = vunpack.c.l.b16 %v258
    %v1118 = vunpack.c.l.b16 %v259
    %v1119 = vunpack.c.l.b16 %v260
    %v1120 = vunpack.c.l.b16 %v261
    %v1121 = vunpack.c.l.b16 %v262
    %v1122 = vunpack.c.l.b16 %v263
    %v1123 = vunpack.c.l.b16 %v264
    %v1124 = vunpack.c.l.b16 %v265
    %v1125 = vunpack.c.l.b16 %v266
    %v1126 = vunpack.c.l.b16 %v267
    %v1127 = vunpack.c.l.b16 %v268
    %v1128 = vunpack.c.l.b16 %v269
    %v1129 = vunpack.c.l.b16 %v270
    %v1130 = vunpack.c.l.b16 %v271
    %v1131 = vunpack.c.l.b16 %v272
    %v1132 = vunpack.c.l.b16 %v273
    %v1133 = vunpack.c.l.b16 %v274
    %v1134 = vunpack.c.l.b16 %v275
    %v1135 = vunpack.c.l.b16 %v276
    %v1136 = vunpack.c.l.b16 %v277
    %v1137 = vunpack.c.l.b16 %v278
    %v1138 = vunpack.c.l.b16 %v279
    %v1139 = vunpack.c.l.b16 %v280
    %v1140 = vunpack.c.l.b16 %v281
    %v1141 = vunpack.c.l.b16 %v282
    %v1142 = vunpack.c.l.b16 %v283
    %v1143 = vunpack.c.l.b16 %v284
    %v1144 = vunpack.c.l.b16 %v285
    %v1145 = vunpack.c.l.b16 %v286
    %v1146 = vunpack.c.l.b16 %v287
    %v1147 = vunpack.c.l.b16 %v288
    %v1148 = vunpack.c.l.b16 %v289
    %v1149 = vunpack.c.l.b16 %v290
    %v1150 = vunpack.c.l.b16 %v291
    %v1151 = vunpack.c.l.b16 %v292
    %v1152 = vunpack.c.l.b16 %v293
    %v1153 = vunpack.c.l.b16 %v294
    %v1154 = vunpack.c.l.b16 %v295
    %v1155 = vunpack.c.l.b16 %v296
    %v1156 = vunpack.c.l.b16 %v297
    %v1157 = vunpack.c.l.b16 %v298
    %v1158 = vunpack.c.l.b16 %v299
    %v1159 = vunpack.c.l.b16 %v300
    %v1160 = vunpack.c.l.b16 %v301
    %v1161 = vunpack.c.l.b16 %v302
    %v1162 = vunpack.c.l.b16 %v303
    %v1163 = vunpack.c.l.b16 %v304
    %v1164 = vunpack.c.l.b16 %v305
    %v1165 = vunpack.c.l.b16 %v306
    %v1166 = vunpack.c.l.b16 %v307
    %v1167 = vunpack.c.l.b16 %v308
    %v1168 = vunpack.c.l.b16 %v309
    %v1169 = vunpack.c.l.b16 %v310
    %v1170 = vunpack.c.l.b16 %v311
    %v1171 = vunpack.c.l.b16 %v312
    %v1172 = vunpack.c.l.b16 %v313
    %v1173 = vunpack.c.l.b16 %v314
    %v1174 = vunpack.c.l.b16 %v315
    %v1175 = vunpack.c.l.b16 %v316
    %v1176 = vunpack.c.l.b16 %v317
    %v1177 = vunpack.c.l.b16 %v318
    %v1178 = vunpack.c.l.b16 %v319
    %v1179 = vunpack.c.l.b16 %v320
    %v1180 = vunpack.c.l.b16 %v321
    %v1181 = vunpack.c.l.b16 %v322
    %v1182 = vunpack.c.l.b16 %v323
    %v1183 = vunpack.c.l.b16 %v324
    %v1184 = vunpack.c.l.b16 %v325
    %v1185 = vunpack.c.l.b16 %v326
    %v1186 = vunpack.c.l.b16 %v327
    %v1187 = vunpack.c.l.b16 %v328
    %v1188 = vunpack.c.l.b16 %v329
    %v1189 = vunpack.c.l.b16 %v330
    %v1190 = vunpack.c.l.b16 %v331
    %v1191 = vunpack.c.l.b16 %v332
    %v1192 = vunpack.c.l.b16 %v333
    %v1193 = vunpack.c.l.b16 %v334
    %v1194 = vunpack.c.l.b16 %v335
    %v1195 = vunpack.c.l.b16 %v336
    %v1196 = vunpack.c.l.b16 %v337
    %v1197 = vunpack.c.l.b16 %v338
    %v1198 = vunpack.c.l.b16 %v339
    %v1199 = vunpack.c.l.b16 %v340
    %v1200 = vunpack.c.l.b16 %v341
    %v1201 = vunpack.c.l.b16 %v342
    %v1202 = vunpack.c.l.b16 %v343
    %v1203 = vunpack.c.l.b16 %v344
    %v1204 = vunpack.c.l.b16 %v345
    %v1205 = vunpack.c.l.b16 %v346
    %v1206 = vunpack.c.l.b16 %v347
    %v1207 = vunpack.c.l.b16 %v348
    %v1208 = vunpack.c.l.b16 %v349
    %v1209 = vunpack.c.l.b16 %v350
    %v1210 = vunpack.c.l.b16 %v351
    %v1211 = vunpack.c.l.b16 %v352
    %v1212 = vunpack.c.l.b16 %v353
    %v1213 = vunpack.c.l.b16 %v354
    %v1214 = vunpack.c.l.b16 %v355
    %v1215 = vunpack.c.l.b16 %v356
    %v1216 = vunpack.c.l.b16 %v357
    %v1217 = vunpack.c.l.b16 %v358
    %v1218 = vunpack.c.l.b16 %v359
    %v1219 = vunpack.c.l.b16 %v360
    %v1220 = vunpack.c.l.b16 %v361
    %v1221 = vunpack.c.l.b16 %v362
    %v1222 = vunpack.c.l.b16 %v363
    %v1223 = vunpack.c.l.b16 %v364
    %v1224 = vunpack.c.l.b16 %v365
    %v1225 = vunpack.c.l.b16 %v366
    %v1226 = vunpack.c.l.b16 %v367
    %v1227 = vunpack.c.l.b16 %v368
    %v1228 = vunpack.c.l.b16 %v369
    %v1229 = vunpack.c.l.b16 %v370
    %v1230 = vunpack.c.l.b16 %v371
    %v1231 = vunpack.c.l.b16 %v372
    %v1232 = vunpack.c.l.b16 %v373
    %v1233 = vunpack.c.l.b16 %v374
    %v1234 = vunpack.c.l.b16 %v375
    %v1235 = vunpack.c.l.b16 %v376
    %v1236 = vunpack.c.l.b16 %v377
    %v1237 = vunpack.c.l.b16 %v378
    %v1238 = vunpack.c.l.b16 %v379
    %v1239 = vunpack.c.l.b16 %v380
    %v1240 = vunpack.c.l.b16 %v381
    %v1241 = vunpack.c.l.b16 %v382
    %v1242 = vunpack.c.l.b16 %v383
    %v1243 = vunpack.c.l.b16 %v384
    %v1244 = vunpack.c.l.b16 %v385
    %v1245 = vunpack.c.l.b16 %v386
    %v1246 = vunpack.c.l.b16 %v387
    %v1247 = vunpack.c.l.b16 %v388
    %v1248 = vunpack.c.l.b16 %v389
    %v1249 = vunpack.c.l.b16 %v390
    %v1250 = vunpack.c.l.b16 %v391
    %v1251 = vunpack.c.l.b16 %v392
    %v1252 = vunpack.c.l.b16 %v393
    %v1253 = vunpack.c.l.b16 %v394
    %v1254 = vunpack.c.l.b16 %v395
    %v1255 = vunpack.c.l.b16 %v396
    %v1256 = vunpack.c.l.b16 %v397
    %v1257 = vunpack.c.l.b16 %v398
    %v1258 = vunpack.c.l.b16 %v399
    %v1259 = vunpack.c.l.b16 %v400
    %v1260 = vunpack.c.l.b16 %v401
    %v1261 = vunpack.c.l.b16 %v402
    %v1262 = vunpack.c.l.b16 %v403
    %v1263 = vunpack.c.l.b16 %v404
    %v1264 = vunpack.c.l.b16 %v405
    %v1265 = vunpack.c.l.b16 %v406
    %v1266 = vunpack.c.l.b16 %v407
    %v1267 = vunpack.c.l.b16 %v408
    %v1268 = vunpack.c.l.b16 %v409
    %v1269 = vunpack.c.l.b16 %v410
    %v1270 = vunpack.c.l.b16 %v411
    %v1271 = vunpack.c.l.b16 %v412
    %v1272 = vunpack.c.l.b16 %v413
    %v1273 = vunpack.c.l.b16 %v414
    %v1274 = vunpack.c.l.b16 %v415
    %v1275 = vunpack.c.l.b16 %v416
    %v1276 = vunpack.c.l.b16 %v417
    %v1277 = vunpack.c.l.b16 %v418
    %v1278 = vunpack.c.l.b16 %v419
    %v1279 = vunpack.c.l.b16 %v420
    %v1280 = vunpack.c.l.b16 %v421
    %v1281 = vunpack.c.l.b16 %v422
    %v1282 = vunpack.c.l.b16 %v423
    %v1283 = vunpack.c.l.b16 %v424
    %v1284 = vunpack.c.l.b16 %v425
    %v1285 = vunpack.c.l.b16 %v426
    %v1286 = vunpack.c.l.b16 %v427
    %v1287 = vunpack.c.l.b16 %v428
    %v1288 = vunpack.c.l.b16 %v429
    %v1289 = vunpack.c.l.b16 %v430
    %v1290 = vunpack.c.l.b16 %v431
    %v1291 = vunpack.c.l.b16 %v432
    %v1292 = vunpack.c.l.b16 %v433
    %v1293 = vunpack.c.l.b16 %v434
    %v1294 = vunpack.c.l.b16 %v435
    %v1295 = vunpack.c.l.b16 %v436
    %v1296 = vunpack.c.l.b16 %v437
    %v1297 = vunpack.c.l.b16 %v438
    %v1298 = vunpack.c.l.b16 %v439
    %v1299 = vunpack.c.l.b16 %v440
    %v1300 = vunpack.c.l.b16 %v441
    %v1301 = vunpack.c.l.b16 %v442
    %v1302 = vunpack.c.l.b16 %v443
    %v1303 = vunpack.c.l.b16 %v444
    %v1304 = vunpack.c.l.b16 %v445
    %v1305 = vunpack.c.l.b16 %v446
    %v1306 = vunpack.c.l.b16 %v447
    %v1307 = vunpack.c.l.b16 %v448
    %v1308 = vunpack.c.l.b16 %v449
    %v1309 = vunpack.c.l.b16 %v450
    %v1310 = vunpack.c.l.b16 %v451
    %v1311 = vunpack.c.l.b16 %v452
    %v1312 = vunpack.c.l.b16 %v453
    %v1313 = vunpack.c.l.b16 %v454
    %v1314 = vunpack.c.l.b16 %v455
    %v1315 = vunpack.c.l.b16 %v456
    %v1316 = vunpack.c.l.b16 %v457
    %v1317 = vunpack.c.l.b16 %v458
    %v1318 = vunpack.c.l.b16 %v459
    %v1319 = vpack.c.b16 %v936, %v935
    %v1320 = vpack.c.b16 %v938, %v937
    %v1321 = vpack.c.b16 %v940, %v939
    %v1322 = vpack.c.b16 %v942, %v941
    %v1323 = vpack.c.b16 %v944, %v943
    %v1324 = vpack.c.b16 %v946, %v945
    %v1325 = vpack.c.b16 %v948, %v947
    %v1326 = vpack.c.b16 %v950, %v949
    %v1327 = vpack.c.b16 %v952, %v951
    %v1328 = vpack.c.b16 %v954, %v953
    %v1329 = vpack.c.b16 %v956, %v955
    %v1330 = vpack.c.b16 %v958, %v957
    %v1331 = vpack.c.b16 %v960, %v959
    %v1332 = vpack.c.b16 %v962, %v961
    %v1333 = vpack.c.b16 %v964, %v963
    %v1334 = vpack.c.b16 %v966, %v965
    %v1335 = vpack.c.b16 %v968, %v967
    %v1336 = vpack.c.b16 %v970, %v969
    %v1337 = vpack.c.b16 %v972, %v971
    %v1338 = vpack.c.b16 %v974, %v973
    %v1339 = vpack.c.b16 %v976, %v975
    %v1340 = vpack.c.b16 %v978, %v977
    %v1341 = vpack.c.b16 %v980, %v979
    %v1342 = vpack.c.b16 %v982, %v981
    %v1343 = vpack.c.b16 %v984, %v983
    %v1344 = vpack.c.b16 %v986, %v985
    %v1345 = vpack.c.b16 %v988, %v987
    %v1346 = vpack.c.b16 %v990, %v989
    %v1347 = vpack.c.b16 %v992, %v991
    %v1348 = vpack.c.b16 %v994, %v993
    %v1349 = vpack.c.b16 %v996, %v995
    %v1350 = vpack.c.b16 %v998, %v997
    %v1351 = vpack.c.b16 %v1000, %v999
    %v1352 = vpack.c.b16 %v1002, %v1001
    %v1353 = vpack.c.b16 %v1004, %v1003
    %v1354 = vpack.c.b16 %v1006, %v1005
    %v1355 = vpack.c.b16 %v1008, %v1007
    %v1356 = vpack.c.b16 %v1010, %v1009
    %v1357 = vpack.c.b16 %v1012, %v1011
    %v1358 = vpack.c.b16 %v1014, %v1013
    %v1359 = vpack.c.b16 %v1016, %v1015
    %v1360 = vpack.c.b16 %v1018, %v1017
    %v1361 = vpack.c.b16 %v1020, %v1019
    %v1362 = vpack.c.b16 %v1022, %v1021
    %v1363 = vpack.c.b16 %v1024, %v1023
    %v1364 = vpack.c.b16 %v1026, %v1025
    %v1365 = vpack.c.b16 %v1028, %v1027
    %v1366 = vpack.c.b16 %v1030, %v1029
    %v1367 = vpack.c.b16 %v1032, %v1031
    %v1368 = vpack.c.b16 %v1034, %v1033
    %v1369 = vpack.c.b16 %v1036, %v1035
    %v1370 = vpack.c.b16 %v1038, %v1037
    %v1371 = vpack.c.b16 %v1040, %v1039
    %v1372 = vpack.c.b16 %v1042, %v1041
    %v1373 = vpack.c.b16 %v1044, %v1043
    %v1374 = vpack.c.b16 %v1046, %v1045
    %v1375 = vpack.c.b16 %v1048, %v1047
    %v1376 = vpack.c.b16 %v1050, %v1049
    %v1377 = vpack.c.b16 %v1052, %v1051
    %v1378 = vpack.c.b16 %v1054, %v1053
    %v1379 = vpack.c.b16 %v1056, %v1055
    %v1380 = vpack.c.b16 %v1058, %v1057
    %v1381 = vpack.c.b16 %v1060, %v1059
    %v1382 = vpack.c.b16 %v1062, %v1061
    %v1383 = vpack.c.b16 %v1064, %v1063
    %v1384 = vpack.c.b16 %v1066, %v1065
    %v1385 = vpack.c.b16 %v1068, %v1067
    %v1386 = vpack.c.b16 %v1070, %v1069
    %v1387 = vpack.c.b16 %v1072, %v1071
    %v1388 = vpack.c.b16 %v1074, %v1073
    %v1389 = vpack.c.b16 %v1076, %v1075
    %v1390 = vpack.c.b16 %v1078, %v1077
    %v1391 = vpack.c.b16 %v1080, %v1079
    %v1392 = vpack.c.b16 %v1082, %v1081
    %v1393 = vpack.c.b16 %v1084, %v1083
    %v1394 = vpack.c.b16 %v1086, %v1085
    %v1395 = vpack.c.b16 %v1088, %v1087
    %v1396 = vpack.c.b16 %v1090, %v1089
    %v1397 = vpack.c.b16 %v1092, %v1091
    %v1398 = vpack.c.b16 %v1094, %v1093
    %v1399 = vpack.c.b16 %v1096, %v1095
    %v1400 = vpack.c.b16 %v1098, %v1097
    %v1401 = vpack.c.b16 %v1100, %v1099
    %v1402 = vpack.c.b16 %v1102, %v1101
    %v1403 = vpack.c.b16 %v1104, %v1103
    %v1404 = vpack.c.b16 %v1106, %v1105
    %v1405 = vpack.c.b16 %v1108, %v1107
    %v1406 = vpack.c.b16 %v1110, %v1109
    %v1407 = vpack.c.b16 %v1112, %v1111
    %v1408 = vpack.c.b16 %v1114, %v1113
    %v1409 = vpack.c.b16 %v1116, %v1115
    %v1410 = vpack.c.b16 %v1118, %v1117
    %v1411 = vpack.c.b16 %v1120, %v1119
    %v1412 = vpack.c.b16 %v1122, %v1121
    %v1413 = vpack.c.b16 %v1124, %v1123
    %v1414 = vpack.c.b16 %v1126, %v1125
    %v1415 = vpack.c.b16 %v1128, %v1127
    %v1416 = vpack.c.b16 %v1130, %v1129
    %v1417 = vpack.c.b16 %v1132, %v1131
    %v1418 = vpack.c.b16 %v1134, %v1133
    %v1419 = vpack.c.b16 %v1136, %v1135
    %v1420 = vpack.c.b16 %v1138, %v1137
    %v1421 = vpack.c.b16 %v1140, %v1139
    %v1422 = vpack.c.b16 %v1142, %v1141
    %v1423 = vpack.c.b16 %v1144, %v1143
    %v1424 = vpack.c.b16 %v1146, %v1145
    %v1425 = vpack.c.b16 %v1148, %v1147
    %v1426 = vpack.c.b16 %v1150, %v1149
    %v1427 = vpack.c.b16 %v1152, %v1151
    %v1428 = vpack.c.b16 %v1154, %v1153
    %v1429 = vpack.c.b16 %v1156, %v1155
    %v1430 = vpack.c.b16 %v1158, %v1157
    %v1431 = vpack.c.b16 %v1160, %v1159
    %v1432 = vpack.c.b16 %v1162, %v1161
    %v1433 = vpack.c.b16 %v1164, %v1163
    %v1434 = vpack.c.b16 %v1166, %v1165
    %v1435 = vpack.c.b16 %v1168, %v1167
    %v1436 = vpack.c.b16 %v1170, %v1169
    %v1437 = vpack.c.b16 %v1172, %v1171
    %v1438 = vpack.c.b16 %v1174, %v1173
    %v1439 = vpack.c.b16 %v1176, %v1175
    %v1440 = vpack.c.b16 %v1178, %v1177
    %v1441 = vpack.c.b16 %v1180, %v1179
    %v1442 = vpack.c.b16 %v1182, %v1181
    %v1443 = vpack.c.b16 %v1184, %v1183
    %v1444 = vpack.c.b16 %v1186, %v1185
    %v1445 = vpack.c.b16 %v1188, %v1187
    %v1446 = vpack.c.b16 %v1190, %v1189
    %v1447 = vpack.c.b16 %v1192, %v1191
    %v1448 = vpack.c.b16 %v1194, %v1193
    %v1449 = vpack.c.b16 %v1196, %v1195
    %v1450 = vpack.c.b16 %v1198, %v1197
    %v1451 = vpack.c.b16 %v1200, %v1199
    %v1452 = vpack.c.b16 %v1202, %v1201
    %v1453 = vpack.c.b16 %v1204, %v1203
    %v1454 = vpack.c.b16 %v1206, %v1205
    %v1455 = vpack.c.b16 %v1208, %v1207
    %v1456 = vpack.c.b16 %v1210, %v1209
    %v1457 = vpack.c.b16 %v1212, %v1211
    %v1458 = vpack.c.b16 %v1214, %v1213
    %v1459 = vpack.c.b16 %v1216, %v1215
    %v1460 = vpack.c.b16 %v1218, %v1217
    %v1461 = vpack.c.b16 %v1220, %v1219
    %v1462 = vpack.c.b16 %v1222, %v1221
    %v1463 = vpack.c.b16 %v1224, %v1223
    %v1464 = vpack.c.b16 %v1226, %v1225
    %v1465 = vpack.c.b16 %v1228, %v1227
    %v1466 = vpack.c.b16 %v1230, %v1229
    %v1467 = vpack.c.b16 %v1232, %v1231
    %v1468 = vpack.c.b16 %v1234, %v1233
    %v1469 = vpack.c.b16 %v1236, %v1235
    %v1470 = vpack.c.b16 %v1238, %v1237
    %v1471 = vpack.c.b16 %v1240, %v1239
    %v1472 = vpack.c.b16 %v1242, %v1241
    %v1473 = vpack.c.b16 %v1244, %v1243
    %v1474 = vpack.c.b16 %v1246, %v1245
    %v1475 = vpack.c.b16 %v1248, %v1247
    %v1476 = vpack.c.b16 %v1250, %v1249
    %v1477 = vpack.c.b16 %v1252, %v1251
    %v1478 = vpack.c.b16 %v1254, %v1253
    %v1479 = vpack.c.b16 %v1256, %v1255
    %v1480 = vpack.c.b16 %v1258, %v1257
    %v1481 = vpack.c.b16 %v1260, %v1259
    %v1482 = vpack.c.b16 %v1262, %v1261
    %v1483 = vpack.c.b16 %v1264, %v1263
    %v1484 = vpack.c.b16 %v1266, %v1265
    %v1485 = vpack.c.b16 %v1268, %v1267
    %v1486 = vpack.c.b16 %v1270, %v1269
    %v1487 = vpack.c.b16 %v1272, %v1271
    %v1488 = vpack.c.b16 %v1274, %v1273
    %v1489 = vpack.c.b16 %v1276, %v1275
    %v1490 = vpack.c.b16 %v1278, %v1277
    %v1491 = vpack.c.b16 %v1280, %v1279
    %v1492 = vpack.c.b16 %v1282, %v1281
    %v1493 = vpack.c.b16 %v1284, %v1283
    %v1494 = vpack.c.b16 %v1286, %v1285
    %v1495 = vpack.c.b16 %v1288, %v1287
    %v1496 = vpack.c.b16 %v1290, %v1289
    %v1497 = vpack.c.b16 %v1292, %v1291
    %v1498 = vpack.c.b16 %v1294, %v1293
    %v1499 = vpack.c.b16 %v1296, %v1295
    %v1500 = vpack.c.b16 %v1298, %v1297
    %v1501 = vpack.c.b16 %v1300, %v1299
    %v1502 = vpack.c.b16 %v1302, %v1301
    %v1503 = vpack.c.b16 %v1304, %v1303
    %v1504 = vpack.c.b16 %v1306, %v1305
    %v1505 = vpack.c.b16 %v1308, %v1307
    %v1506 = vpack.c.b16 %v1310, %v1309
    %v1507 = vpack.c.b16 %v1312, %v1311
    %v1508 = vpack.c.b16 %v1314, %v1313
    %v1509 = vpack.c.b16 %v1316, %v1315
    %v1510 = vpack.c.b16 %v1318, %v1317
    %1703 = vmatprep.subr.bf16.mxu0 0
    %1704 = vmatpush1.bf16.msra.mxu0 %v1319
    %1705 = vmatprep.subr.bf16.mxu0 0
    %1706 = vmatpush1.bf16.msra.mxu0 %v1320
    %1707 = vmatprep.subr.bf16.mxu0 0
    %1708 = vmatpush1.bf16.msra.mxu0 %v1321
    %1709 = vmatprep.subr.bf16.mxu0 0
    %1710 = vmatpush1.bf16.msra.mxu0 %v1322
    %1711 = vmatprep.subr.bf16.mxu0 0
    %1712 = vmatpush1.bf16.msra.mxu0 %v1323
    %1713 = vmatprep.subr.bf16.mxu0 0
    %1714 = vmatpush1.bf16.msra.mxu0 %v1324
    %1715 = vmatprep.subr.bf16.mxu0 0
    %1716 = vmatpush1.bf16.msra.mxu0 %v1325
    %1717 = vmatprep.subr.bf16.mxu0 0
    %1718 = vmatpush1.bf16.msra.mxu0 %v1326
    %1719 = vmatprep.subr.bf16.mxu0 0
    %1720 = vmatpush1.bf16.msra.mxu0 %v1327
    %1721 = vmatprep.subr.bf16.mxu0 0
    %1722 = vmatpush1.bf16.msra.mxu0 %v1328
    %1723 = vmatprep.subr.bf16.mxu0 0
    %1724 = vmatpush1.bf16.msra.mxu0 %v1329
    %1725 = vmatprep.subr.bf16.mxu0 0
    %1726 = vmatpush1.bf16.msra.mxu0 %v1330
    %1727 = vmatprep.subr.bf16.mxu0 0
    %1728 = vmatpush1.bf16.msra.mxu0 %v1331
    %1729 = vmatprep.subr.bf16.mxu0 0
    %1730 = vmatpush1.bf16.msra.mxu0 %v1332
    %1731 = vmatprep.subr.bf16.mxu0 0
    %1732 = vmatpush1.bf16.msra.mxu0 %v1333
    %1733 = vmatprep.subr.bf16.mxu0 0
    %1734 = vmatpush1.bf16.msra.mxu0 %v1334
    %1735 = vmatprep.mubr.bf16.mxu0 %v504
    %1736 = vmatmul.mubr.bf16.gmra.mrb[0].mxu0 %v503
    %v1737 = vpop.f32.mrb[0].mxu0
    %v1738 = vadd.f32 %v465, %v1737
    %v1739 = vpop.f32.mrb[0].mxu0
    %v1740 = vpop.f32.mrb[0].mxu0
    %v1741 = vpop.f32.mrb[0].mxu0
    %1742 = vdwg.mxu0
    %1743 = vmatprep.subr.bf16.mxu0 0
    %1744 = vmatpush1.bf16.msra.mxu0 %v1335
    %1745 = vmatprep.subr.bf16.mxu0 0
    %1746 = vmatpush1.bf16.msra.mxu0 %v1336
    %1747 = vmatprep.subr.bf16.mxu0 0
    %1748 = vmatpush1.bf16.msra.mxu0 %v1337
    %1749 = vmatprep.subr.bf16.mxu0 0
    %1750 = vmatpush1.bf16.msra.mxu0 %v1338
    %1751 = vmatprep.subr.bf16.mxu0 0
    %1752 = vmatpush1.bf16.msra.mxu0 %v1339
    %1753 = vmatprep.subr.bf16.mxu0 0
    %1754 = vmatpush1.bf16.msra.mxu0 %v1340
    %1755 = vmatprep.subr.bf16.mxu0 0
    %1756 = vmatpush1.bf16.msra.mxu0 %v1341
    %1757 = vmatprep.subr.bf16.mxu0 0
    %1758 = vmatpush1.bf16.msra.mxu0 %v1342
    %1759 = vmatprep.subr.bf16.mxu0 0
    %1760 = vmatpush1.bf16.msra.mxu0 %v1343
    %1761 = vmatprep.subr.bf16.mxu0 0
    %1762 = vmatpush1.bf16.msra.mxu0 %v1344
    %1763 = vmatprep.subr.bf16.mxu0 0
    %1764 = vmatpush1.bf16.msra.mxu0 %v1345
    %1765 = vmatprep.subr.bf16.mxu0 0
    %1766 = vmatpush1.bf16.msra.mxu0 %v1346
    %1767 = vmatprep.subr.bf16.mxu0 0
    %1768 = vmatpush1.bf16.msra.mxu0 %v1347
    %1769 = vmatprep.subr.bf16.mxu0 0
    %1770 = vmatpush1.bf16.msra.mxu0 %v1348
    %1771 = vmatprep.subr.bf16.mxu0 0
    %1772 = vmatpush1.bf16.msra.mxu0 %v1349
    %1773 = vmatprep.subr.bf16.mxu0 0
    %1774 = vmatpush1.bf16.msra.mxu0 %v1350
    %1775 = vmatprep.mubr.bf16.mxu0 %v506
    %1776 = vmatmul.mubr.bf16.gmra.mrb[0].mxu0 %v505
    %v1777 = vpop.f32.mrb[0].mxu0
    %v1778 = vadd.f32 %v1738, %v1777
    %v1779 = vpop.f32.mrb[0].mxu0
    %v1780 = vpop.f32.mrb[0].mxu0
    %v1781 = vpop.f32.mrb[0].mxu0
    %1782 = vdwg.mxu0
    %1783 = vmatprep.subr.bf16.mxu0 0
    %1784 = vmatpush1.bf16.msra.mxu0 %v1351
    %1785 = vmatprep.subr.bf16.mxu0 0
    %1786 = vmatpush1.bf16.msra.mxu0 %v1352
    %1787 = vmatprep.subr.bf16.mxu0 0
    %1788 = vmatpush1.bf16.msra.mxu0 %v1353
    %1789 = vmatprep.subr.bf16.mxu0 0
    %1790 = vmatpush1.bf16.msra.mxu0 %v1354
    %1791 = vmatprep.subr.bf16.mxu0 0
    %1792 = vmatpush1.bf16.msra.mxu0 %v1355
    %1793 = vmatprep.subr.bf16.mxu0 0
    %1794 = vmatpush1.bf16.msra.mxu0 %v1356
    %1795 = vmatprep.subr.bf16.mxu0 0
    %1796 = vmatpush1.bf16.msra.mxu0 %v1357
    %1797 = vmatprep.subr.bf16.mxu0 0
    %1798 = vmatpush1.bf16.msra.mxu0 %v1358
    %1799 = vmatprep.subr.bf16.mxu0 0
    %1800 = vmatpush1.bf16.msra.mxu0 %v1359
    %1801 = vmatprep.subr.bf16.mxu0 0
    %1802 = vmatpush1.bf16.msra.mxu0 %v1360
    %1803 = vmatprep.subr.bf16.mxu0 0
    %1804 = vmatpush1.bf16.msra.mxu0 %v1361
    %1805 = vmatprep.subr.bf16.mxu0 0
    %1806 = vmatpush1.bf16.msra.mxu0 %v1362
    %1807 = vmatprep.subr.bf16.mxu0 0
    %1808 = vmatpush1.bf16.msra.mxu0 %v1363
    %1809 = vmatprep.subr.bf16.mxu0 0
    %1810 = vmatpush1.bf16.msra.mxu0 %v1364
    %1811 = vmatprep.subr.bf16.mxu0 0
    %1812 = vmatpush1.bf16.msra.mxu0 %v1365
    %1813 = vmatprep.subr.bf16.mxu0 0
    %1814 = vmatpush1.bf16.msra.mxu0 %v1366
    %1815 = vmatprep.mubr.bf16.mxu0 %v508
    %1816 = vmatmul.mubr.bf16.gmra.mrb[0].mxu0 %v507
    %v1817 = vpop.f32.mrb[0].mxu0
    %v1818 = vadd.f32 %v1778, %v1817
    %v1819 = vpop.f32.mrb[0].mxu0
    %v1820 = vpop.f32.mrb[0].mxu0
    %v1821 = vpop.f32.mrb[0].mxu0
    %1822 = vdwg.mxu0
    %1823 = vmatprep.subr.bf16.mxu0 0
    %1824 = vmatpush1.bf16.msra.mxu0 %v1367
    %1825 = vmatprep.subr.bf16.mxu0 0
    %1826 = vmatpush1.bf16.msra.mxu0 %v1368
    %1827 = vmatprep.subr.bf16.mxu0 0
    %1828 = vmatpush1.bf16.msra.mxu0 %v1369
    %1829 = vmatprep.subr.bf16.mxu0 0
    %1830 = vmatpush1.bf16.msra.mxu0 %v1370
    %1831 = vmatprep.subr.bf16.mxu0 0
    %1832 = vmatpush1.bf16.msra.mxu0 %v1371
    %1833 = vmatprep.subr.bf16.mxu0 0
    %1834 = vmatpush1.bf16.msra.mxu0 %v1372
    %1835 = vmatprep.subr.bf16.mxu0 0
    %1836 = vmatpush1.bf16.msra.mxu0 %v1373
    %1837 = vmatprep.subr.bf16.mxu0 0
    %1838 = vmatpush1.bf16.msra.mxu0 %v1374
    %1839 = vmatprep.subr.bf16.mxu0 0
    %1840 = vmatpush1.bf16.msra.mxu0 %v1375
    %1841 = vmatprep.subr.bf16.mxu0 0
    %1842 = vmatpush1.bf16.msra.mxu0 %v1376
    %1843 = vmatprep.subr.bf16.mxu0 0
    %1844 = vmatpush1.bf16.msra.mxu0 %v1377
    %1845 = vmatprep.subr.bf16.mxu0 0
    %1846 = vmatpush1.bf16.msra.mxu0 %v1378
    %1847 = vmatprep.subr.bf16.mxu0 0
    %1848 = vmatpush1.bf16.msra.mxu0 %v1379
    %1849 = vmatprep.subr.bf16.mxu0 0
    %1850 = vmatpush1.bf16.msra.mxu0 %v1380
    %1851 = vmatprep.subr.bf16.mxu0 0
    %1852 = vmatpush1.bf16.msra.mxu0 %v1381
    %1853 = vmatprep.subr.bf16.mxu0 0
    %1854 = vmatpush1.bf16.msra.mxu0 %v1382
    %1855 = vmatprep.mubr.bf16.mxu0 %v510
    %1856 = vmatmul.mubr.bf16.gmra.mrb[0].mxu0 %v509
    %v1857 = vpop.f32.mrb[0].mxu0
    %v1858 = vadd.f32 %v1818, %v1857
    %v1859 = vpop.f32.mrb[0].mxu0
    %v1860 = vpop.f32.mrb[0].mxu0
    %v1861 = vpop.f32.mrb[0].mxu0
    %1862 = vdwg.mxu0
    %1863 = vmatprep.subr.bf16.mxu0 0
    %1864 = vmatpush1.bf16.msra.mxu0 %v1383
    %1865 = vmatprep.subr.bf16.mxu0 0
    %1866 = vmatpush1.bf16.msra.mxu0 %v1384
    %1867 = vmatprep.subr.bf16.mxu0 0
    %1868 = vmatpush1.bf16.msra.mxu0 %v1385
    %1869 = vmatprep.subr.bf16.mxu0 0
    %1870 = vmatpush1.bf16.msra.mxu0 %v1386
    %1871 = vmatprep.subr.bf16.mxu0 0
    %1872 = vmatpush1.bf16.msra.mxu0 %v1387
    %1873 = vmatprep.subr.bf16.mxu0 0
    %1874 = vmatpush1.bf16.msra.mxu0 %v1388
    %1875 = vmatprep.subr.bf16.mxu0 0
    %1876 = vmatpush1.bf16.msra.mxu0 %v1389
    %1877 = vmatprep.subr.bf16.mxu0 0
    %1878 = vmatpush1.bf16.msra.mxu0 %v1390
    %1879 = vmatprep.subr.bf16.mxu0 0
    %1880 = vmatpush1.bf16.msra.mxu0 %v1391
    %1881 = vmatprep.subr.bf16.mxu0 0
    %1882 = vmatpush1.bf16.msra.mxu0 %v1392
    %1883 = vmatprep.subr.bf16.mxu0 0
    %1884 = vmatpush1.bf16.msra.mxu0 %v1393
    %1885 = vmatprep.subr.bf16.mxu0 0
    %1886 = vmatpush1.bf16.msra.mxu0 %v1394
    %1887 = vmatprep.subr.bf16.mxu0 0
    %1888 = vmatpush1.bf16.msra.mxu0 %v1395
    %1889 = vmatprep.subr.bf16.mxu0 0
    %1890 = vmatpush1.bf16.msra.mxu0 %v1396
    %1891 = vmatprep.subr.bf16.mxu0 0
    %1892 = vmatpush1.bf16.msra.mxu0 %v1397
    %1893 = vmatprep.subr.bf16.mxu0 0
    %1894 = vmatpush1.bf16.msra.mxu0 %v1398
    %1895 = vmatprep.mubr.bf16.mxu0 %v512
    %1896 = vmatmul.mubr.bf16.gmra.mrb[0].mxu0 %v511
    %v1897 = vpop.f32.mrb[0].mxu0
    %v1898 = vadd.f32 %v1858, %v1897
    %v1899 = vpop.f32.mrb[0].mxu0
    %v1900 = vpop.f32.mrb[0].mxu0
    %v1901 = vpop.f32.mrb[0].mxu0
    %1902 = vdwg.mxu0
    %1903 = vmatprep.subr.bf16.mxu0 0
    %1904 = vmatpush1.bf16.msra.mxu0 %v1399
    %1905 = vmatprep.subr.bf16.mxu0 0
    %1906 = vmatpush1.bf16.msra.mxu0 %v1400
    %1907 = vmatprep.subr.bf16.mxu0 0
    %1908 = vmatpush1.bf16.msra.mxu0 %v1401
    %1909 = vmatprep.subr.bf16.mxu0 0
    %1910 = vmatpush1.bf16.msra.mxu0 %v1402
    %1911 = vmatprep.subr.bf16.mxu0 0
    %1912 = vmatpush1.bf16.msra.mxu0 %v1403
    %1913 = vmatprep.subr.bf16.mxu0 0
    %1914 = vmatpush1.bf16.msra.mxu0 %v1404
    %1915 = vmatprep.subr.bf16.mxu0 0
    %1916 = vmatpush1.bf16.msra.mxu0 %v1405
    %1917 = vmatprep.subr.bf16.mxu0 0
    %1918 = vmatpush1.bf16.msra.mxu0 %v1406
    %1919 = vmatprep.subr.bf16.mxu0 0
    %1920 = vmatpush1.bf16.msra.mxu0 %v1407
    %1921 = vmatprep.subr.bf16.mxu0 0
    %1922 = vmatpush1.bf16.msra.mxu0 %v1408
    %1923 = vmatprep.subr.bf16.mxu0 0
    %1924 = vmatpush1.bf16.msra.mxu0 %v1409
    %1925 = vmatprep.subr.bf16.mxu0 0
    %1926 = vmatpush1.bf16.msra.mxu0 %v1410
    %1927 = vmatprep.subr.bf16.mxu0 0
    %1928 = vmatpush1.bf16.msra.mxu0 %v1411
    %1929 = vmatprep.subr.bf16.mxu0 0
    %1930 = vmatpush1.bf16.msra.mxu0 %v1412
    %1931 = vmatprep.subr.bf16.mxu0 0
    %1932 = vmatpush1.bf16.msra.mxu0 %v1413
    %1933 = vmatprep.subr.bf16.mxu0 0
    %1934 = vmatpush1.bf16.msra.mxu0 %v1414
    %1935 = vmatprep.mubr.bf16.mxu0 %v514
    %1936 = vmatmul.mubr.bf16.gmra.mrb[0].mxu0 %v513
    %v1937 = vpop.f32.mrb[0].mxu0
    %v1938 = vadd.f32 %v1898, %v1937
    %v1939 = vpop.f32.mrb[0].mxu0
    %v1940 = vpop.f32.mrb[0].mxu0
    %v1941 = vpop.f32.mrb[0].mxu0
    %1942 = vdwg.mxu0
    %1943 = vmatprep.subr.bf16.mxu0 0
    %1944 = vmatpush1.bf16.msra.mxu0 %v1415
    %1945 = vmatprep.subr.bf16.mxu0 0
    %1946 = vmatpush1.bf16.msra.mxu0 %v1416
    %1947 = vmatprep.subr.bf16.mxu0 0
    %1948 = vmatpush1.bf16.msra.mxu0 %v1417
    %1949 = vmatprep.subr.bf16.mxu0 0
    %1950 = vmatpush1.bf16.msra.mxu0 %v1418
    %1951 = vmatprep.subr.bf16.mxu0 0
    %1952 = vmatpush1.bf16.msra.mxu0 %v1419
    %1953 = vmatprep.subr.bf16.mxu0 0
    %1954 = vmatpush1.bf16.msra.mxu0 %v1420
    %1955 = vmatprep.subr.bf16.mxu0 0
    %1956 = vmatpush1.bf16.msra.mxu0 %v1421
    %1957 = vmatprep.subr.bf16.mxu0 0
    %1958 = vmatpush1.bf16.msra.mxu0 %v1422
    %1959 = vmatprep.subr.bf16.mxu0 0
    %1960 = vmatpush1.bf16.msra.mxu0 %v1423
    %1961 = vmatprep.subr.bf16.mxu0 0
    %1962 = vmatpush1.bf16.msra.mxu0 %v1424
    %1963 = vmatprep.subr.bf16.mxu0 0
    %1964 = vmatpush1.bf16.msra.mxu0 %v1425
    %1965 = vmatprep.subr.bf16.mxu0 0
    %1966 = vmatpush1.bf16.msra.mxu0 %v1426
    %1967 = vmatprep.subr.bf16.mxu0 0
    %1968 = vmatpush1.bf16.msra.mxu0 %v1427
    %1969 = vmatprep.subr.bf16.mxu0 0
    %1970 = vmatpush1.bf16.msra.mxu0 %v1428
    %1971 = vmatprep.subr.bf16.mxu0 0
    %1972 = vmatpush1.bf16.msra.mxu0 %v1429
    %1973 = vmatprep.subr.bf16.mxu0 0
    %1974 = vmatpush1.bf16.msra.mxu0 %v1430
    %1975 = vmatprep.mubr.bf16.mxu0 %v516
    %1976 = vmatmul.mubr.bf16.gmra.mrb[0].mxu0 %v515
    %v1977 = vpop.f32.mrb[0].mxu0
    %v1978 = vadd.f32 %v1938, %v1977
    %v1979 = vpop.f32.mrb[0].mxu0
    %v1980 = vpop.f32.mrb[0].mxu0
    %v1981 = vpop.f32.mrb[0].mxu0
    %1982 = vdwg.mxu0
    %1983 = vmatprep.subr.bf16.mxu0 0
    %1984 = vmatpush1.bf16.msra.mxu0 %v1431
    %1985 = vmatprep.subr.bf16.mxu0 0
    %1986 = vmatpush1.bf16.msra.mxu0 %v1432
    %1987 = vmatprep.subr.bf16.mxu0 0
    %1988 = vmatpush1.bf16.msra.mxu0 %v1433
    %1989 = vmatprep.subr.bf16.mxu0 0
    %1990 = vmatpush1.bf16.msra.mxu0 %v1434
    %1991 = vmatprep.subr.bf16.mxu0 0
    %1992 = vmatpush1.bf16.msra.mxu0 %v1435
    %1993 = vmatprep.subr.bf16.mxu0 0
    %1994 = vmatpush1.bf16.msra.mxu0 %v1436
    %1995 = vmatprep.subr.bf16.mxu0 0
    %1996 = vmatpush1.bf16.msra.mxu0 %v1437
    %1997 = vmatprep.subr.bf16.mxu0 0
    %1998 = vmatpush1.bf16.msra.mxu0 %v1438
    %1999 = vmatprep.subr.bf16.mxu0 0
    %2000 = vmatpush1.bf16.msra.mxu0 %v1439
    %2001 = vmatprep.subr.bf16.mxu0 0
    %2002 = vmatpush1.bf16.msra.mxu0 %v1440
    %2003 = vmatprep.subr.bf16.mxu0 0
    %2004 = vmatpush1.bf16.msra.mxu0 %v1441
    %2005 = vmatprep.subr.bf16.mxu0 0
    %2006 = vmatpush1.bf16.msra.mxu0 %v1442
    %2007 = vmatprep.subr.bf16.mxu0 0
    %2008 = vmatpush1.bf16.msra.mxu0 %v1443
    %2009 = vmatprep.subr.bf16.mxu0 0
    %2010 = vmatpush1.bf16.msra.mxu0 %v1444
    %2011 = vmatprep.subr.bf16.mxu0 0
    %2012 = vmatpush1.bf16.msra.mxu0 %v1445
    %2013 = vmatprep.subr.bf16.mxu0 0
    %2014 = vmatpush1.bf16.msra.mxu0 %v1446
    %2015 = vmatprep.mubr.bf16.mxu0 %v518
    %2016 = vmatmul.mubr.bf16.gmra.mrb[0].mxu0 %v517
    %v2017 = vpop.f32.mrb[0].mxu0
    %v2018 = vadd.f32 %v1978, %v2017
    %v2019 = vpop.f32.mrb[0].mxu0
    %v2020 = vpop.f32.mrb[0].mxu0
    %v2021 = vpop.f32.mrb[0].mxu0
    %2022 = vdwg.mxu0
    %2023 = vmatprep.subr.bf16.mxu0 0
    %2024 = vmatpush1.bf16.msra.mxu0 %v1447
    %2025 = vmatprep.subr.bf16.mxu0 0
    %2026 = vmatpush1.bf16.msra.mxu0 %v1448
    %2027 = vmatprep.subr.bf16.mxu0 0
    %2028 = vmatpush1.bf16.msra.mxu0 %v1449
    %2029 = vmatprep.subr.bf16.mxu0 0
    %2030 = vmatpush1.bf16.msra.mxu0 %v1450
    %2031 = vmatprep.subr.bf16.mxu0 0
    %2032 = vmatpush1.bf16.msra.mxu0 %v1451
    %2033 = vmatprep.subr.bf16.mxu0 0
    %2034 = vmatpush1.bf16.msra.mxu0 %v1452
    %2035 = vmatprep.subr.bf16.mxu0 0
    %2036 = vmatpush1.bf16.msra.mxu0 %v1453
    %2037 = vmatprep.subr.bf16.mxu0 0
    %2038 = vmatpush1.bf16.msra.mxu0 %v1454
    %2039 = vmatprep.subr.bf16.mxu0 0
    %2040 = vmatpush1.bf16.msra.mxu0 %v1455
    %2041 = vmatprep.subr.bf16.mxu0 0
    %2042 = vmatpush1.bf16.msra.mxu0 %v1456
    %2043 = vmatprep.subr.bf16.mxu0 0
    %2044 = vmatpush1.bf16.msra.mxu0 %v1457
    %2045 = vmatprep.subr.bf16.mxu0 0
    %2046 = vmatpush1.bf16.msra.mxu0 %v1458
    %2047 = vmatprep.subr.bf16.mxu0 0
    %2048 = vmatpush1.bf16.msra.mxu0 %v1459
    %2049 = vmatprep.subr.bf16.mxu0 0
    %2050 = vmatpush1.bf16.msra.mxu0 %v1460
    %2051 = vmatprep.subr.bf16.mxu0 0
    %2052 = vmatpush1.bf16.msra.mxu0 %v1461
    %2053 = vmatprep.subr.bf16.mxu0 0
    %2054 = vmatpush1.bf16.msra.mxu0 %v1462
    %2055 = vmatprep.mubr.bf16.mxu0 %v520
    %2056 = vmatmul.mubr.bf16.gmra.mrb[0].mxu0 %v519
    %v2057 = vpop.f32.mrb[0].mxu0
    %v2058 = vadd.f32 %v2018, %v2057
    %v2059 = vpop.f32.mrb[0].mxu0
    %v2060 = vpop.f32.mrb[0].mxu0
    %v2061 = vpop.f32.mrb[0].mxu0
    %2062 = vdwg.mxu0
    %2063 = vmatprep.subr.bf16.mxu0 0
    %2064 = vmatpush1.bf16.msra.mxu0 %v1463
    %2065 = vmatprep.subr.bf16.mxu0 0
    %2066 = vmatpush1.bf16.msra.mxu0 %v1464
    %2067 = vmatprep.subr.bf16.mxu0 0
    %2068 = vmatpush1.bf16.msra.mxu0 %v1465
    %2069 = vmatprep.subr.bf16.mxu0 0
    %2070 = vmatpush1.bf16.msra.mxu0 %v1466
    %2071 = vmatprep.subr.bf16.mxu0 0
    %2072 = vmatpush1.bf16.msra.mxu0 %v1467
    %2073 = vmatprep.subr.bf16.mxu0 0
    %2074 = vmatpush1.bf16.msra.mxu0 %v1468
    %2075 = vmatprep.subr.bf16.mxu0 0
    %2076 = vmatpush1.bf16.msra.mxu0 %v1469
    %2077 = vmatprep.subr.bf16.mxu0 0
    %2078 = vmatpush1.bf16.msra.mxu0 %v1470
    %2079 = vmatprep.subr.bf16.mxu0 0
    %2080 = vmatpush1.bf16.msra.mxu0 %v1471
    %2081 = vmatprep.subr.bf16.mxu0 0
    %2082 = vmatpush1.bf16.msra.mxu0 %v1472
    %2083 = vmatprep.subr.bf16.mxu0 0
    %2084 = vmatpush1.bf16.msra.mxu0 %v1473
    %2085 = vmatprep.subr.bf16.mxu0 0
    %2086 = vmatpush1.bf16.msra.mxu0 %v1474
    %2087 = vmatprep.subr.bf16.mxu0 0
    %2088 = vmatpush1.bf16.msra.mxu0 %v1475
    %2089 = vmatprep.subr.bf16.mxu0 0
    %2090 = vmatpush1.bf16.msra.mxu0 %v1476
    %2091 = vmatprep.subr.bf16.mxu0 0
    %2092 = vmatpush1.bf16.msra.mxu0 %v1477
    %2093 = vmatprep.subr.bf16.mxu0 0
    %2094 = vmatpush1.bf16.msra.mxu0 %v1478
    %2095 = vmatprep.mubr.bf16.mxu0 %v522
    %2096 = vmatmul.mubr.bf16.gmra.mrb[0].mxu0 %v521
    %v2097 = vpop.f32.mrb[0].mxu0
    %v2098 = vadd.f32 %v2058, %v2097
    %v2099 = vpop.f32.mrb[0].mxu0
    %v2100 = vpop.f32.mrb[0].mxu0
    %v2101 = vpop.f32.mrb[0].mxu0
    %2102 = vdwg.mxu0
    %2103 = vmatprep.subr.bf16.mxu0 0
    %2104 = vmatpush1.bf16.msra.mxu0 %v1479
    %2105 = vmatprep.subr.bf16.mxu0 0
    %2106 = vmatpush1.bf16.msra.mxu0 %v1480
    %2107 = vmatprep.subr.bf16.mxu0 0
    %2108 = vmatpush1.bf16.msra.mxu0 %v1481
    %2109 = vmatprep.subr.bf16.mxu0 0
    %2110 = vmatpush1.bf16.msra.mxu0 %v1482
    %2111 = vmatprep.subr.bf16.mxu0 0
    %2112 = vmatpush1.bf16.msra.mxu0 %v1483
    %2113 = vmatprep.subr.bf16.mxu0 0
    %2114 = vmatpush1.bf16.msra.mxu0 %v1484
    %2115 = vmatprep.subr.bf16.mxu0 0
    %2116 = vmatpush1.bf16.msra.mxu0 %v1485
    %2117 = vmatprep.subr.bf16.mxu0 0
    %2118 = vmatpush1.bf16.msra.mxu0 %v1486
    %2119 = vmatprep.subr.bf16.mxu0 0
    %2120 = vmatpush1.bf16.msra.mxu0 %v1487
    %2121 = vmatprep.subr.bf16.mxu0 0
    %2122 = vmatpush1.bf16.msra.mxu0 %v1488
    %2123 = vmatprep.subr.bf16.mxu0 0
    %2124 = vmatpush1.bf16.msra.mxu0 %v1489
    %2125 = vmatprep.subr.bf16.mxu0 0
    %2126 = vmatpush1.bf16.msra.mxu0 %v1490
    %2127 = vmatprep.subr.bf16.mxu0 0
    %2128 = vmatpush1.bf16.msra.mxu0 %v1491
    %2129 = vmatprep.subr.bf16.mxu0 0
    %2130 = vmatpush1.bf16.msra.mxu0 %v1492
    %2131 = vmatprep.subr.bf16.mxu0 0
    %2132 = vmatpush1.bf16.msra.mxu0 %v1493
    %2133 = vmatprep.subr.bf16.mxu0 0
    %2134 = vmatpush1.bf16.msra.mxu0 %v1494
    %2135 = vmatprep.mubr.bf16.mxu0 %v524
    %2136 = vmatmul.mubr.bf16.gmra.mrb[0].mxu0 %v523
    %v2137 = vpop.f32.mrb[0].mxu0
    %v2138 = vadd.f32 %v2098, %v2137
    %v2139 = vpop.f32.mrb[0].mxu0
    %v2140 = vpop.f32.mrb[0].mxu0
    %v2141 = vpop.f32.mrb[0].mxu0
    %2142 = vdwg.mxu0
    %2143 = vmatprep.subr.bf16.mxu0 0
    %2144 = vmatpush1.bf16.msra.mxu0 %v1495
    %2145 = vmatprep.subr.bf16.mxu0 0
    %2146 = vmatpush1.bf16.msra.mxu0 %v1496
    %2147 = vmatprep.subr.bf16.mxu0 0
    %2148 = vmatpush1.bf16.msra.mxu0 %v1497
    %2149 = vmatprep.subr.bf16.mxu0 0
    %2150 = vmatpush1.bf16.msra.mxu0 %v1498
    %2151 = vmatprep.subr.bf16.mxu0 0
    %2152 = vmatpush1.bf16.msra.mxu0 %v1499
    %2153 = vmatprep.subr.bf16.mxu0 0
    %2154 = vmatpush1.bf16.msra.mxu0 %v1500
    %2155 = vmatprep.subr.bf16.mxu0 0
    %2156 = vmatpush1.bf16.msra.mxu0 %v1501
    %2157 = vmatprep.subr.bf16.mxu0 0
    %2158 = vmatpush1.bf16.msra.mxu0 %v1502
    %2159 = vmatprep.subr.bf16.mxu0 0
    %2160 = vmatpush1.bf16.msra.mxu0 %v1503
    %2161 = vmatprep.subr.bf16.mxu0 0
    %2162 = vmatpush1.bf16.msra.mxu0 %v1504
    %2163 = vmatprep.subr.bf16.mxu0 0
    %2164 = vmatpush1.bf16.msra.mxu0 %v1505
    %2165 = vmatprep.subr.bf16.mxu0 0
    %2166 = vmatpush1.bf16.msra.mxu0 %v1506
    %2167 = vmatprep.subr.bf16.mxu0 0
    %2168 = vmatpush1.bf16.msra.mxu0 %v1507
    %2169 = vmatprep.subr.bf16.mxu0 0
    %2170 = vmatpush1.bf16.msra.mxu0 %v1508
    %2171 = vmatprep.subr.bf16.mxu0 0
    %2172 = vmatpush1.bf16.msra.mxu0 %v1509
    %2173 = vmatprep.subr.bf16.mxu0 0
    %2174 = vmatpush1.bf16.msra.mxu0 %v1510
    %2175 = vmatprep.mubr.bf16.mxu0 %v526
    %2176 = vmatmul.mubr.bf16.gmra.mrb[0].mxu0 %v525
    %v2177 = vpop.f32.mrb[0].mxu0
    %v2178 = vadd.f32 %v2138, %v2177
    %v2179 = vpop.f32.mrb[0].mxu0
    %v2180 = vpop.f32.mrb[0].mxu0
    %v2181 = vpop.f32.mrb[0].mxu0
    %2182 = vdwg.mxu0
    %v2183 = vmax.f32 %v2178, 0.0
    %v2184 = vld [vmem:[%s4] sm:$0xff]
    %v2185 = vld [vmem:[%s4 + $0x8] sm:$0xff]
    %v2186 = vld [vmem:[%s4 + $0x10] sm:$0xff]
    %v2187 = vld [vmem:[%s4 + $0x18] sm:$0xff]
    %v2188 = vld [vmem:[%s4 + $0x20] sm:$0xff]
    %v2189 = vld [vmem:[%s4 + $0x28] sm:$0xff]
    %v2190 = vld [vmem:[%s4 + $0x30] sm:$0xff]
    %v2191 = vld [vmem:[%s4 + $0x38] sm:$0xff]
    %v2192 = vld [vmem:[%s4 + $0x40] sm:$0xff]
    %v2193 = vld [vmem:[%s4 + $0x48] sm:$0xff]
    %v2194 = vld [vmem:[%s4 + $0x50] sm:$0xff]
    %v2195 = vld [vmem:[%s4 + $0x58] sm:$0xff]
    %v2196 = vld [vmem:[%s4 + $0x60] sm:$0xff]
    %v2197 = vld [vmem:[%s4 + $0x68] sm:$0xff]
    %v2198 = vld [vmem:[%s4 + $0x70] sm:$0xff]
    %v2199 = vld [vmem:[%s4 + $0x78] sm:$0xff]
    %v2200 = vld [vmem:[%s4 + $0x80] sm:$0xff]
    %v2201 = vld [vmem:[%s4 + $0x88] sm:$0xff]
    %v2202 = vld [vmem:[%s4 + $0x90] sm:$0xff]
    %v2203 = vld [vmem:[%s4 + $0x98] sm:$0xff]
    %v2204 = vld [vmem:[%s4 + $0xa0] sm:$0xff]
    %v2205 = vld [vmem:[%s4 + $0xa8] sm:$0xff]
    %v2206 = vld [vmem:[%s4 + $0xb0] sm:$0xff]
    %v2207 = vld [vmem:[%s4 + $0xb8] sm:$0xff]
    %v2208 = vld [vmem:[%s4 + $0xc0] sm:$0xff]
    %v2209 = vld [vmem:[%s4 + $0xc8] sm:$0xff]
    %v2210 = vld [vmem:[%s4 + $0xd0] sm:$0xff]
    %v2211 = vld [vmem:[%s4 + $0xd8] sm:$0xff]
    %v2212 = vld [vmem:[%s4 + $0xe0] sm:$0xff]
    %v2213 = vld [vmem:[%s4 + $0xe8] sm:$0xff]
    %v2214 = vld [vmem:[%s4 + $0xf0] sm:$0xff]
    %v2215 = vld [vmem:[%s4 + $0xf8] sm:$0xff]
    %v2216 = vld [vmem:[%s5] sm:$0x3]
    %v2218 = vlaneseq
    %v2219 = vshrl.u32 %v2218, 7
    %v2220 = vsub.s32 0, %v2219
    %v2221 = vrot.slane %v2216, %v2220
    %v2222 = vlaneseq
    %v2223 = vshrl.u32 %v2222, 7
    %v2224 = vsub.s32 1, %v2223
    %v2225 = vrot.slane %v2216, %v2224
    %2228 = vmatprep.subr.mxu0 %v2185
    %2229 = vmatpush1.msra.mxu0 %v2184
    %2230 = vmatprep.subr.mxu0 %v2187
    %2231 = vmatpush1.msra.mxu0 %v2186
    %2232 = vmatprep.subr.mxu0 %v2189
    %2233 = vmatpush1.msra.mxu0 %v2188
    %2234 = vmatprep.subr.mxu0 %v2191
    %2235 = vmatpush1.msra.mxu0 %v2190
    %2236 = vmatprep.subr.mxu0 %v2193
    %2237 = vmatpush1.msra.mxu0 %v2192
    %2238 = vmatprep.subr.mxu0 %v2195
    %2239 = vmatpush1.msra.mxu0 %v2194
    %2240 = vmatprep.subr.mxu0 %v2197
    %2241 = vmatpush1.msra.mxu0 %v2196
    %2242 = vmatprep.subr.mxu0 %v2199
    %2243 = vmatpush1.msra.mxu0 %v2198
    %2244 = vmatprep.subr.mxu0 %v2201
    %2245 = vmatpush1.msra.mxu0 %v2200
    %2246 = vmatprep.subr.mxu0 %v2203
    %2247 = vmatpush1.msra.mxu0 %v2202
    %2248 = vmatprep.subr.mxu0 %v2205
    %2249 = vmatpush1.msra.mxu0 %v2204
    %2250 = vmatprep.subr.mxu0 %v2207
    %2251 = vmatpush1.msra.mxu0 %v2206
    %2252 = vmatprep.subr.mxu0 %v2209
    %2253 = vmatpush1.msra.mxu0 %v2208
    %2254 = vmatprep.subr.mxu0 %v2211
    %2255 = vmatpush1.msra.mxu0 %v2210
    %2256 = vmatprep.subr.mxu0 %v2213
    %2257 = vmatpush1.msra.mxu0 %v2212
    %2258 = vmatprep.subr.mxu0 %v2215
    %2259 = vmatpush1.msra.mxu0 %v2214
    %2260 = vmatprep.subr.mxu0 0.0
    %2261 = vmatpush1.msra.mxu0 0.0
    %2262 = vmatprep.subr.mxu0 0.0
    %2263 = vmatpush1.msra.mxu0 0.0
    %2264 = vmatprep.subr.mxu0 0.0
    %2265 = vmatpush1.msra.mxu0 0.0
    %2266 = vmatprep.subr.mxu0 0.0
    %2267 = vmatpush1.msra.mxu0 0.0
    %2268 = vmatprep.subr.mxu0 0.0
    %2269 = vmatpush1.msra.mxu0 0.0
    %2270 = vmatprep.subr.mxu0 0.0
    %2271 = vmatpush1.msra.mxu0 0.0
    %2272 = vmatprep.subr.mxu0 0.0
    %2273 = vmatpush1.msra.mxu0 0.0
    %2274 = vmatprep.subr.mxu0 0.0
    %2275 = vmatpush1.msra.mxu0 0.0
    %2276 = vmatprep.subr.mxu0 0.0
    %2277 = vmatpush1.msra.mxu0 0.0
    %2278 = vmatprep.subr.mxu0 0.0
    %2279 = vmatpush1.msra.mxu0 0.0
    %2280 = vmatprep.subr.mxu0 0.0
    %2281 = vmatpush1.msra.mxu0 0.0
    %2282 = vmatprep.subr.mxu0 0.0
    %2283 = vmatpush1.msra.mxu0 0.0
    %2284 = vmatprep.subr.mxu0 0.0
    %2285 = vmatpush1.msra.mxu0 0.0
    %2286 = vmatprep.subr.mxu0 0.0
    %2287 = vmatpush1.msra.mxu0 0.0
    %2288 = vmatprep.subr.mxu0 0.0
    %2289 = vmatpush1.msra.mxu0 0.0
    %2290 = vmatprep.subr.mxu0 0.0
    %2291 = vmatpush1.msra.mxu0 0.0
    %2292 = vmatprep.mubr.f32.mxu0 0.0
    %2293 = vmatmul.mubr.f32.gmra.mrb[0].mxu0 %v2183
    %v2294 = vpop.f32.mrb[0].mxu0
    %v2295 = vadd.f32 %v2221, %v2294
    %v2296 = vpop.f32.mrb[0].mxu0
    %v2297 = vadd.f32 %v2225, %v2296
    %2298 = vdwg.mxu0
    %v2299 = vmax.f32 %v2295, 0.0
    %v2300 = vmax.f32 %v2297, 0.0
    %v2301 = vld [vmem:[%s6] sm:$0xff]
    %v2302 = vld [vmem:[%s6 + $0x8] sm:$0xff]
    %v2303 = vld [vmem:[%s6 + $0x10] sm:$0xff]
    %v2304 = vld [vmem:[%s6 + $0x18] sm:$0xff]
    %v2305 = vld [vmem:[%s6 + $0x20] sm:$0xff]
    %v2306 = vld [vmem:[%s6 + $0x28] sm:$0xff]
    %v2307 = vld [vmem:[%s6 + $0x30] sm:$0xff]
    %v2308 = vld [vmem:[%s6 + $0x38] sm:$0xff]
    %v2309 = vld [vmem:[%s6 + $0x40] sm:$0xff]
    %v2310 = vld [vmem:[%s6 + $0x48] sm:$0xff]
    %v2311 = vld [vmem:[%s6 + $0x50] sm:$0xff]
    %v2312 = vld [vmem:[%s6 + $0x58] sm:$0xff]
    %v2313 = vld [vmem:[%s6 + $0x60] sm:$0xff]
    %v2314 = vld [vmem:[%s6 + $0x68] sm:$0xff]
    %v2315 = vld [vmem:[%s6 + $0x70] sm:$0xff]
    %v2316 = vld [vmem:[%s6 + $0x78] sm:$0xff]
    %v2317 = vld [vmem:[%s6 + $0x80] sm:$0xff]
    %v2318 = vld [vmem:[%s6 + $0x88] sm:$0xff]
    %v2319 = vld [vmem:[%s6 + $0x90] sm:$0xff]
    %v2320 = vld [vmem:[%s6 + $0x98] sm:$0xff]
    %v2321 = vld [vmem:[%s6 + $0xa0] sm:$0xff]
    %v2322 = vld [vmem:[%s6 + $0xa8] sm:$0xff]
    %v2323 = vld [vmem:[%s6 + $0xb0] sm:$0xff]
    %v2324 = vld [vmem:[%s6 + $0xb8] sm:$0xff]
    %v2325 = vld [vmem:[%s6 + $0xc0] sm:$0xff]
    %v2326 = vld [vmem:[%s6 + $0xc8] sm:$0xff]
    %v2327 = vld [vmem:[%s6 + $0xd0] sm:$0xff]
    %v2328 = vld [vmem:[%s6 + $0xd8] sm:$0xff]
    %v2329 = vld [vmem:[%s6 + $0xe0] sm:$0xff]
    %v2330 = vld [vmem:[%s6 + $0xe8] sm:$0xff]
    %v2331 = vld [vmem:[%s6 + $0xf0] sm:$0xff]
    %v2332 = vld [vmem:[%s6 + $0xf8] sm:$0xff]
    %v2333 = vld [vmem:[%s7] sm:$0x1]
    %v2335 = vlaneseq
    %v2336 = vshrl.u32 %v2335, 7
    %v2337 = vsub.s32 0, %v2336
    %v2338 = vrot.slane %v2333, %v2337
    %2340 = vmatprep.subr.mxu0 0.0
    %2341 = vmatpush1.msra.mxu0 %v2301
    %2342 = vmatprep.subr.mxu0 0.0
    %2343 = vmatpush1.msra.mxu0 %v2302
    %2344 = vmatprep.subr.mxu0 0.0
    %2345 = vmatpush1.msra.mxu0 %v2303
    %2346 = vmatprep.subr.mxu0 0.0
    %2347 = vmatpush1.msra.mxu0 %v2304
    %2348 = vmatprep.subr.mxu0 0.0
    %2349 = vmatpush1.msra.mxu0 %v2305
    %2350 = vmatprep.subr.mxu0 0.0
    %2351 = vmatpush1.msra.mxu0 %v2306
    %2352 = vmatprep.subr.mxu0 0.0
    %2353 = vmatpush1.msra.mxu0 %v2307
    %2354 = vmatprep.subr.mxu0 0.0
    %2355 = vmatpush1.msra.mxu0 %v2308
    %2356 = vmatprep.subr.mxu0 0.0
    %2357 = vmatpush1.msra.mxu0 %v2309
    %2358 = vmatprep.subr.mxu0 0.0
    %2359 = vmatpush1.msra.mxu0 %v2310
    %2360 = vmatprep.subr.mxu0 0.0
    %2361 = vmatpush1.msra.mxu0 %v2311
    %2362 = vmatprep.subr.mxu0 0.0
    %2363 = vmatpush1.msra.mxu0 %v2312
    %2364 = vmatprep.subr.mxu0 0.0
    %2365 = vmatpush1.msra.mxu0 %v2313
    %2366 = vmatprep.subr.mxu0 0.0
    %2367 = vmatpush1.msra.mxu0 %v2314
    %2368 = vmatprep.subr.mxu0 0.0
    %2369 = vmatpush1.msra.mxu0 %v2315
    %2370 = vmatprep.subr.mxu0 0.0
    %2371 = vmatpush1.msra.mxu0 %v2316
    %2372 = vmatprep.subr.mxu0 0.0
    %2373 = vmatpush1.msra.mxu0 %v2317
    %2374 = vmatprep.subr.mxu0 0.0
    %2375 = vmatpush1.msra.mxu0 %v2318
    %2376 = vmatprep.subr.mxu0 0.0
    %2377 = vmatpush1.msra.mxu0 %v2319
    %2378 = vmatprep.subr.mxu0 0.0
    %2379 = vmatpush1.msra.mxu0 %v2320
    %2380 = vmatprep.subr.mxu0 0.0
    %2381 = vmatpush1.msra.mxu0 %v2321
    %2382 = vmatprep.subr.mxu0 0.0
    %2383 = vmatpush1.msra.mxu0 %v2322
    %2384 = vmatprep.subr.mxu0 0.0
    %2385 = vmatpush1.msra.mxu0 %v2323
    %2386 = vmatprep.subr.mxu0 0.0
    %2387 = vmatpush1.msra.mxu0 %v2324
    %2388 = vmatprep.subr.mxu0 0.0
    %2389 = vmatpush1.msra.mxu0 %v2325
    %2390 = vmatprep.subr.mxu0 0.0
    %2391 = vmatpush1.msra.mxu0 %v2326
    %2392 = vmatprep.subr.mxu0 0.0
    %2393 = vmatpush1.msra.mxu0 %v2327
    %2394 = vmatprep.subr.mxu0 0.0
    %2395 = vmatpush1.msra.mxu0 %v2328
    %2396 = vmatprep.subr.mxu0 0.0
    %2397 = vmatpush1.msra.mxu0 %v2329
    %2398 = vmatprep.subr.mxu0 0.0
    %2399 = vmatpush1.msra.mxu0 %v2330
    %2400 = vmatprep.subr.mxu0 0.0
    %2401 = vmatpush1.msra.mxu0 %v2331
    %2402 = vmatprep.subr.mxu0 0.0
    %2403 = vmatpush1.msra.mxu0 %v2332
    %2404 = vmatprep.mubr.f32.mxu0 %v2300
    %2405 = vmatmul.mubr.f32.gmra.mrb[0].mxu0 %v2299
    %v2406 = vpop.f32.mrb[0].mxu0
    %v2407 = vadd.f32 %v2338, %v2406
    %v2408 = vpop.f32.mrb[0].mxu0
    %2409 = vdwg.mxu0
    %v2410 = vmax.f32 %v2407, 0.0
    %v2411 = vld [vmem:[%s1] sm:$0xff]
    %vm2412 = vcmp.ge.u32.totalorder %v2411, 858993459
    %v2413 = vmul.f32 %v2410, 1.25
    %v2414 = vsel %vm2412, %v2413, 0.0
    %v2415 = vld [vmem:[#allocation4] sm:$0xff]
    %v2416 = vld [vmem:[#allocation4 + $0x8] sm:$0xff]
    %v2417 = vld [vmem:[#allocation4 + $0x10] sm:$0xff]
    %v2418 = vld [vmem:[#allocation4 + $0x18] sm:$0xff]
    %v2419 = vld [vmem:[#allocation4 + $0x20] sm:$0xff]
    %v2420 = vld [vmem:[#allocation4 + $0x28] sm:$0xff]
    %v2421 = vld [vmem:[#allocation4 + $0x30] sm:$0xff]
    %v2422 = vld [vmem:[#allocation4 + $0x38] sm:$0xff]
    %v2423 = vld [vmem:[#allocation4 + $0x40] sm:$0xff]
    %v2424 = vld [vmem:[#allocation4 + $0x48] sm:$0xff]
    %v2425 = vld [vmem:[#allocation4 + $0x50] sm:$0xff]
    %v2426 = vld [vmem:[#allocation4 + $0x58] sm:$0xff]
    %v2427 = vld [vmem:[#allocation4 + $0x60] sm:$0xff]
    %v2428 = vld [vmem:[#allocation4 + $0x68] sm:$0xff]
    %v2429 = vld [vmem:[#allocation4 + $0x70] sm:$0xff]
    %v2430 = vld [vmem:[#allocation4 + $0x78] sm:$0xff]
    %v2431 = vld [vmem:[%s9] sm:$0x1]
    %v2433 = vlaneseq
    %v2434 = vshrl.u32 %v2433, 7
    %v2435 = vsub.s32 0, %v2434
    %v2436 = vrot.slane %v2431, %v2435
    %2438 = vmatprep.subr.mxu0 0.0
    %2439 = vmatpush1.msra.mxu0 %v2415
    %2440 = vmatprep.subr.mxu0 0.0
    %2441 = vmatpush1.msra.mxu0 %v2416
    %2442 = vmatprep.subr.mxu0 0.0
    %2443 = vmatpush1.msra.mxu0 %v2417
    %2444 = vmatprep.subr.mxu0 0.0
    %2445 = vmatpush1.msra.mxu0 %v2418
    %2446 = vmatprep.subr.mxu0 0.0
    %2447 = vmatpush1.msra.mxu0 %v2419
    %2448 = vmatprep.subr.mxu0 0.0
    %2449 = vmatpush1.msra.mxu0 %v2420
    %2450 = vmatprep.subr.mxu0 0.0
    %2451 = vmatpush1.msra.mxu0 %v2421
    %2452 = vmatprep.subr.mxu0 0.0
    %2453 = vmatpush1.msra.mxu0 %v2422
    %2454 = vmatprep.subr.mxu0 0.0
    %2455 = vmatpush1.msra.mxu0 %v2423
    %2456 = vmatprep.subr.mxu0 0.0
    %2457 = vmatpush1.msra.mxu0 %v2424
    %2458 = vmatprep.subr.mxu0 0.0
    %2459 = vmatpush1.msra.mxu0 %v2425
    %2460 = vmatprep.subr.mxu0 0.0
    %2461 = vmatpush1.msra.mxu0 %v2426
    %2462 = vmatprep.subr.mxu0 0.0
    %2463 = vmatpush1.msra.mxu0 %v2427
    %2464 = vmatprep.subr.mxu0 0.0
    %2465 = vmatpush1.msra.mxu0 %v2428
    %2466 = vmatprep.subr.mxu0 0.0
    %2467 = vmatpush1.msra.mxu0 %v2429
    %2468 = vmatprep.subr.mxu0 0.0
    %2469 = vmatpush1.msra.mxu0 %v2430
    %2470 = vmatprep.subr.mxu0 0.0
    %2471 = vmatpush1.msra.mxu0 0.0
    %2472 = vmatprep.subr.mxu0 0.0
    %2473 = vmatpush1.msra.mxu0 0.0
    %2474 = vmatprep.subr.mxu0 0.0
    %2475 = vmatpush1.msra.mxu0 0.0
    %2476 = vmatprep.subr.mxu0 0.0
    %2477 = vmatpush1.msra.mxu0 0.0
    %2478 = vmatprep.subr.mxu0 0.0
    %2479 = vmatpush1.msra.mxu0 0.0
    %2480 = vmatprep.subr.mxu0 0.0
    %2481 = vmatpush1.msra.mxu0 0.0
    %2482 = vmatprep.subr.mxu0 0.0
    %2483 = vmatpush1.msra.mxu0 0.0
    %2484 = vmatprep.subr.mxu0 0.0
    %2485 = vmatpush1.msra.mxu0 0.0
    %2486 = vmatprep.subr.mxu0 0.0
    %2487 = vmatpush1.msra.mxu0 0.0
    %2488 = vmatprep.subr.mxu0 0.0
    %2489 = vmatpush1.msra.mxu0 0.0
    %2490 = vmatprep.subr.mxu0 0.0
    %2491 = vmatpush1.msra.mxu0 0.0
    %2492 = vmatprep.subr.mxu0 0.0
    %2493 = vmatpush1.msra.mxu0 0.0
    %2494 = vmatprep.subr.mxu0 0.0
    %2495 = vmatpush1.msra.mxu0 0.0
    %2496 = vmatprep.subr.mxu0 0.0
    %2497 = vmatpush1.msra.mxu0 0.0
    %2498 = vmatprep.subr.mxu0 0.0
    %2499 = vmatpush1.msra.mxu0 0.0
    %2500 = vmatprep.subr.mxu0 0.0
    %2501 = vmatpush1.msra.mxu0 0.0
    %2502 = vmatprep.mubr.f32.mxu0 0.0
    %2503 = vmatmul.mubr.f32.gmra.mrb[0].mxu0 %v2414
    %v2504 = vpop.f32.mrb[0].mxu0
    %v2505 = vadd.f32 %v2436, %v2504
    %v2506 = vpop.f32.mrb[0].mxu0
    %2507 = vdwg.mxu0
    %v2508 = vlaneseq
    %v2509 = vand.u32 %v2508, 127
    %vm2510 = vcmp.lt.s32.totalorder %v2509, 10
    %v2511 = vsel %vm2510, %v2505, -inf
    %2512 = vmax.xlane.f32.xlu0 %v2511
    %v2513 = vpop.xlane.xlu0 %2512
    %v2514 = vsub.f32 %v2511, %v2513
    %v2515 = vmul.f32 %v2514, 1.442695
    %v2516 = vpow.pop %v2515
    %2517 = vadd.xlane.f32.xlu0 %v2516
    %v2518 = vpop.xlane.xlu0 %2517
    %v2519 = vrcp.pop %v2518
    %v2520 = vmul.f32 %v2516, %v2519
    %2521 = vst [vmem:[%s10] sm:$0xff] %v2520
    // Predicated region
    $region50: #{mlp_forward.1} parent=1 // pred_check
      _
    $region51: #{mlp_forward.1} parent=1 // pred_check_branch
      %2523 = sbr.rel (0) target = $region53
    $region52: #{mlp_forward.1} parent=1 // pred_region
      _
    $region53: #{mlp_forward.1} parent=1 // pred_fallthru
      _
    // Predicated region
    $region54: #{mlp_forward.1} parent=1 // pred_check
      _
    $region55: #{mlp_forward.1} parent=1 // pred_check_branch
      %2525 = sbr.rel (0) target = $region57
    $region56: #{mlp_forward.1} parent=1 // pred_region
      _
    $region57: #{mlp_forward.1} parent=1 // pred_fallthru
      _
    %2526 = vsyncpa [#allocation3], 1
    %2527 = vsyncpa [#allocation5], 1

</llo_original>
